<compile_context>
chip_gen: v7x
topology: tpu7x:2x2x1
jax: 0.10.0
libtpu: 0.0.40
codegen_flags: <defaults>
</compile_context>

<pallas_src>
import functools

import jax
import jax.numpy as jnp
from jax import lax
from jax.experimental import pallas as pl
from jax.experimental.pallas import tpu as pltpu


_UNROLL_MAX = 32   # full-unroll bound (review: keep vreg pressure / compile time in check)


def conv_bsru_kernel(frames_ref, wconv_ref, wsru_ref, ubias_ref, v_ref,
                     wfc_ref, wdec_ref, out_ref, *, L, B):
    C = wconv_ref.shape[1]
    H = C

    # ---- Conv1d (stride == kernel_size, no bias) as one frame matmul ----
    conv_out = jnp.dot(frames_ref[...], wconv_ref[...],
                       preferred_element_type=jnp.float32)            # (L*B, C)

    # ---- SRU layer-norm statistics only (affine folded into w_sru'/u_bias) ----
    mu = jnp.mean(conv_out, axis=-1, keepdims=True)
    var = jnp.mean((conv_out - mu) ** 2, axis=-1, keepdims=True)
    normed = (conv_out - mu) * lax.rsqrt(var + 1e-5)

    # ---- U = normed @ W' + bias : ONE 8H-wide MXU dot, kept as a value (vregs).
    #      Column blocks (H wide): [x_f, res_f, f_f, r_f, x_b, res_b, f_b, r_b];
    #      the gate columns already include LN-beta and the SRU gate biases. ----
    u = jnp.dot(normed, wsru_ref[...],
                preferred_element_type=jnp.float32) + ubias_ref[...]   # (L*B, 8H)

    # gate scale constants, broadcast ONCE (hoisted out of the serial loop)
    vff = jnp.broadcast_to(v_ref[0:1, :], (B, H))
    vrf = jnp.broadcast_to(v_ref[1:2, :], (B, H))
    vfb = jnp.broadcast_to(v_ref[2:3, :], (B, H))
    vrb = jnp.broadcast_to(v_ref[3:4, :], (B, H))

    def dir_step(c, u_t, vf, vr):
        # u_t: (B, 4H) = [x, res, f_pre(+bias), r_pre(+bias)] for one direction, one step.
        x, res = u_t[:, 0:H], u_t[:, H:2 * H]
        f = jax.nn.sigmoid(u_t[:, 2 * H:3 * H] + vf * c)
        r = jax.nn.sigmoid(u_t[:, 3 * H:4 * H] + vr * c)
        c = f * (c - x) + x          # == f*c + (1-f)*x, shorter post-sigmoid dependence
        h = r * (c - res) + res      # == r*c + (1-r)*res
        return c, h

    c0 = jnp.zeros((B, H), jnp.float32)

    if L <= _UNROLL_MAX:
        # Fully unrolled: every operand is a static slice of the U *value*; fwd and bwd
        # chains are independent and interleave; nothing but c->sigmoid->c on the chain.
        c_f, c_b = c0, c0
        hf = [None] * L
        hb = [None] * L
        for t in range(L):
            tb = L - 1 - t
            uf = u[t * B:(t + 1) * B, 0:4 * H]
            ub = u[tb * B:(tb + 1) * B, 4 * H:8 * H]
            c_f, hf[t] = dir_step(c_f, uf, vff, vrf)
            c_b, hb[tb] = dir_step(c_b, ub, vfb, vrb)
        h_all = jnp.concatenate([jnp.concatenate(hf, axis=0),
                                 jnp.concatenate(hb, axis=0)], axis=-1)  # (L*B, 2H)
    else:
        # TODO(synk): for production L, tile over L with pltpu.emit_pipeline keeping only the
        #             (B,H) carries live; this value-based fori fallback keeps U resident.
        def body(t, carry):
            c_f, c_b, h_acc = carry
            tb = L - 1 - t
            uf = lax.dynamic_slice(u, (t * B, 0), (B, 4 * H))
            ub = lax.dynamic_slice(u, (tb * B, 4 * H), (B, 4 * H))
            c_f, h_f = dir_step(c_f, uf, vff, vrf)
            c_b, h_b = dir_step(c_b, ub, vfb, vrb)
            h_acc = lax.dynamic_update_slice(h_acc, h_f, (t * B, 0))
            h_acc = lax.dynamic_update_slice(h_acc, h_b, (tb * B, H))
            return c_f, c_b, h_acc

        h0 = jnp.zeros((L * B, 2 * H), jnp.float32)
        _, _, h_all = lax.fori_loop(0, L, body, (c0, c0, h0), unroll=8)

    # ---- outfc as ONE 2H-contraction dot -> gate -> deconv -> tanh ----
    fc_out = jnp.dot(h_all, wfc_ref[...], preferred_element_type=jnp.float32)   # (L*B, C)
    gated = conv_out * fc_out                        # module: output_ * outfc(sru(output_))
    dec = jnp.dot(gated, wdec_ref[...], preferred_element_type=jnp.float32)     # (L*B, K)
    out_ref[...] = jnp.tanh(dec)


def conv_bsru_forward(x, params, frame_size):
    """x: (B, 1, T) fp32, T a multiple of frame_size. Returns (B, 1, T)."""
    B, _, T = x.shape
    K = frame_size
    L = T // K
    C = params["w_conv"].shape[1]
    H = C

    # ---- layout plumbing stays in XLA: (B,1,T) -> time-major 2-D (L*B, K) ----
    frames = x.reshape(B, L, K).transpose(1, 0, 2).reshape(L * B, K).astype(jnp.float32)

    # ---- fold LN affine + SRU gate biases into the U projection; reorder columns.
    #      original block order: [x_f, f_f, r_f, res_f, x_b, f_b, r_b, res_b]
    #      new block order     : [x_f, res_f, f_f, r_f, x_b, res_b, f_b, r_b] ----
    perm = jnp.array([0, 3, 1, 2, 4, 7, 5, 6])
    w_sru = params["w_sru"]
    gamma = params["ln_g"].reshape(C, 1)
    beta = params["ln_b"].reshape(1, C)
    w_sru_eff = (gamma * w_sru).reshape(C, 8, H)[:, perm, :].reshape(C, 8 * H)
    u_bias = (beta @ w_sru).reshape(8, H)[perm]                 # LN-beta contribution
    gate_bias = params["bias"]                                  # (4,H): [f_f, r_f, f_b, r_b]
    u_bias = (u_bias.at[2].add(gate_bias[0]).at[3].add(gate_bias[1])
                     .at[6].add(gate_bias[2]).at[7].add(gate_bias[3])).reshape(1, 8 * H)

    # ---- VMEM / cost sizing from actual bytes (not a flat cap) ----
    itemsize = 4
    n_rows = L * B
    inter_bytes = itemsize * n_rows * (2 * C + 8 * H + 2 * H + 2 * C + K)
    io_bytes = itemsize * (n_rows * K * 2 + K * C + C * 8 * H + 8 * H + 4 * H
                           + 2 * H * C + C * K)
    vmem_limit = int(min(max(16 * 1024 * 1024, 4 * (inter_bytes + io_bytes)),
                         100 * 1024 * 1024))
    flops = 2 * n_rows * (K * C + C * 8 * H + 2 * H * C + C * K)
    transcend = n_rows * (4 * H + K + 1)
    cost = pl.CostEstimate(flops=flops, transcendentals=transcend, bytes_accessed=io_bytes)

    kernel = functools.partial(conv_bsru_kernel, L=L, B=B)
    out2d = pl.pallas_call(
        kernel,
        out_shape=jax.ShapeDtypeStruct((L * B, K), jnp.float32),
        in_specs=[pl.BlockSpec(memory_space=pltpu.MemorySpace.VMEM)] * 7,
        out_specs=pl.BlockSpec(memory_space=pltpu.MemorySpace.VMEM),
        compiler_params=pltpu.CompilerParams(vmem_limit_bytes=vmem_limit),
        cost_estimate=cost,
    )(frames, params["w_conv"], w_sru_eff, u_bias, params["v_c"],
      params["w_fc"], params["w_deconv"])

    return out2d.reshape(L, B, K).transpose(1, 0, 2).reshape(B, 1, T)


def reference_forward(x, params, frame_size):
    """Pure-JAX reference with fp32 (HIGHEST precision) matmuls — ground truth."""
    B, _, T = x.shape
    K = frame_size
    L = T // K
    C = params["w_conv"].shape[1]
    H = C
    prec = lax.Precision.HIGHEST

    frames = x.reshape(B, L, K).transpose(1, 0, 2).reshape(L * B, K)
    conv_out = jnp.dot(frames, params["w_conv"], precision=prec)
    mu = conv_out.mean(-1, keepdims=True)
    var = ((conv_out - mu) ** 2).mean(-1, keepdims=True)
    x_ln = (conv_out - mu) * lax.rsqrt(var + 1e-5) * params["ln_g"] + params["ln_b"]

    U = jnp.dot(x_ln, params["w_sru"], precision=prec).reshape(L, B, 8, H)
    vc, bias = params["v_c"], params["bias"]

    def fwd_step(c, u):
        f = jax.nn.sigmoid(u[:, 1] + vc[0:1] * c + bias[0:1])
        r = jax.nn.sigmoid(u[:, 2] + vc[1:2] * c + bias[1:2])
        c = f * c + (1.0 - f) * u[:, 0]
        return c, r * c + (1.0 - r) * u[:, 3]

    def bwd_step(c, u):
        f = jax.nn.sigmoid(u[:, 5] + vc[2:3] * c + bias[2:3])
        r = jax.nn.sigmoid(u[:, 6] + vc[3:4] * c + bias[3:4])
        c = f * c + (1.0 - f) * u[:, 4]
        return c, r * c + (1.0 - r) * u[:, 7]

    c0 = jnp.zeros((B, H), jnp.float32)
    _, hf = lax.scan(fwd_step, c0, U)
    _, hb = lax.scan(bwd_step, c0, U, reverse=True)
    h = jnp.concatenate([hf, hb], axis=-1).reshape(L * B, 2 * H)

    fc_out = jnp.dot(h, params["w_fc"], precision=prec)
    gated = conv_out * fc_out
    dec = jnp.dot(gated, params["w_deconv"], precision=prec)
    return jnp.tanh(dec).reshape(L, B, K).transpose(1, 0, 2).reshape(B, 1, T)


def init_params(key, frame_size, conv_channels):
    K, C, H = frame_size, conv_channels, conv_channels
    ks = jax.random.split(key, 8)
    return {
        "w_conv": jax.random.normal(ks[0], (K, C), jnp.float32) / jnp.sqrt(K),
        # nontrivial LN affine / gate bias so the wrapper-side folding is actually validated
        "ln_g": 1.0 + 0.1 * jax.random.normal(ks[1], (1, C), jnp.float32),
        "ln_b": 0.1 * jax.random.normal(ks[2], (1, C), jnp.float32),
        "w_sru": jax.random.normal(ks[3], (C, 8 * H), jnp.float32) / jnp.sqrt(C),
        "v_c": jax.random.normal(ks[4], (4, H), jnp.float32) * 0.1,
        "bias": 0.1 * jax.random.normal(ks[5], (4, H), jnp.float32),
        "w_fc": jax.random.normal(ks[6], (2 * H, C), jnp.float32) / jnp.sqrt(2 * H),
        "w_deconv": jax.random.normal(ks[7], (C, K), jnp.float32) / jnp.sqrt(C),
    }


if __name__ == "__main__":
    frame_size = 16      # stride == frame_size -> padding = 0 branch of ConvBSRU
    conv_channels = 32
    B, T = 2, 128        # T = L * frame_size, L = 8

    key = jax.random.PRNGKey(0)
    k_x, k_p = jax.random.split(key)
    x = jax.random.normal(k_x, (B, 1, T), jnp.float32)
    params = init_params(k_p, frame_size, conv_channels)

    fwd = jax.jit(functools.partial(conv_bsru_forward, frame_size=frame_size))
    y = fwd(x, params)
    jax.block_until_ready(y)

    y_ref = reference_forward(x, params, frame_size)
    assert y.shape == (B, 1, T)
    # Kernel matmuls use native (default-precision) MXU passes; vs the fp32 HIGHEST-precision
    # reference this gives ~bf16-level rounding through the matmul chain, and the output is
    # tanh-bounded, so compare with an absolute tolerance well below bug-magnitude errors.
    assert jnp.max(jnp.abs(y - y_ref)) < 5e-2

    print("KERNEL_OK")
</pallas_src>

<mosaic_0001>
module attributes {stable_mosaic.version = 11 : i64} {
  func.func @conv_bsru_kernel(%arg0: memref<16x16xf32, #tpu.memory_space<vmem>>, %arg1: memref<16x32xf32, #tpu.memory_space<vmem>>, %arg2: memref<32x256xf32, #tpu.memory_space<vmem>>, %arg3: memref<1x256xf32, #tpu.memory_space<vmem>>, %arg4: memref<4x32xf32, #tpu.memory_space<vmem>>, %arg5: memref<64x32xf32, #tpu.memory_space<vmem>>, %arg6: memref<32x16xf32, #tpu.memory_space<vmem>>, %arg7: memref<16x16xf32, #tpu.memory_space<vmem>>) attributes {dimension_semantics = [], scalar_prefetch = 0 : i64, scratch_operands = 0 : i64, tpu.core_type = #tpu.core_type<tc>} {
    %c0 = arith.constant 0 : index
    %c0_0 = arith.constant 0 : index
    %0 = vector.load %arg0[%c0, %c0_0] : memref<16x16xf32, #tpu.memory_space<vmem>>, vector<16x16xf32>
    %c0_1 = arith.constant 0 : index
    %c0_2 = arith.constant 0 : index
    %1 = vector.load %arg1[%c0_1, %c0_2] : memref<16x32xf32, #tpu.memory_space<vmem>>, vector<16x32xf32>
    %cst = arith.constant dense<0.000000e+00> : vector<16x32xf32>
    %2 = tpu.matmul %0, %1, %cst {dimension_numbers = #tpu.dot_dimension_numbers<[1], [0], [0], [1], [0, 0, 1, 1], [], []>} : vector<16x16xf32>, vector<16x32xf32>, vector<16x32xf32> -> vector<16x32xf32>
    %cst_3 = arith.constant dense<0.000000e+00> : vector<16xf32>
    %3 = vector.multi_reduction <add>, %2, %cst_3 [1] : vector<16x32xf32> to vector<16xf32>
    %4 = vector.shape_cast %3 : vector<16xf32> to vector<16x1xf32>
    %cst_4 = arith.constant 3.200000e+01 : f32
    %5 = vector.broadcast %cst_4 : f32 to vector<16x1xf32>
    %6 = arith.divf %4, %5 : vector<16x1xf32>
    %7 = vector.broadcast %6 : vector<16x1xf32> to vector<16x32xf32>
    %8 = arith.subf %2, %7 : vector<16x32xf32>
    %9 = arith.mulf %8, %8 : vector<16x32xf32>
    %cst_5 = arith.constant dense<0.000000e+00> : vector<16xf32>
    %10 = vector.multi_reduction <add>, %9, %cst_5 [1] : vector<16x32xf32> to vector<16xf32>
    %11 = vector.shape_cast %10 : vector<16xf32> to vector<16x1xf32>
    %cst_6 = arith.constant 3.200000e+01 : f32
    %12 = vector.broadcast %cst_6 : f32 to vector<16x1xf32>
    %13 = arith.divf %11, %12 : vector<16x1xf32>
    %14 = vector.broadcast %6 : vector<16x1xf32> to vector<16x32xf32>
    %15 = arith.subf %2, %14 : vector<16x32xf32>
    %cst_7 = arith.constant 9.99999974E-6 : f32
    %16 = vector.broadcast %cst_7 : f32 to vector<16x1xf32>
    %17 = arith.addf %13, %16 : vector<16x1xf32>
    %18 = math.rsqrt %17 : vector<16x1xf32>
    %19 = vector.broadcast %18 : vector<16x1xf32> to vector<16x32xf32>
    %20 = arith.mulf %15, %19 : vector<16x32xf32>
    %c0_8 = arith.constant 0 : index
    %c0_9 = arith.constant 0 : index
    %21 = vector.load %arg2[%c0_8, %c0_9] : memref<32x256xf32, #tpu.memory_space<vmem>>, vector<32x256xf32>
    %cst_10 = arith.constant dense<0.000000e+00> : vector<16x256xf32>
    %22 = tpu.matmul %20, %21, %cst_10 {dimension_numbers = #tpu.dot_dimension_numbers<[1], [0], [0], [1], [0, 0, 1, 1], [], []>} : vector<16x32xf32>, vector<32x256xf32>, vector<16x256xf32> -> vector<16x256xf32>
    %c0_11 = arith.constant 0 : index
    %c0_12 = arith.constant 0 : index
    %23 = vector.load %arg3[%c0_11, %c0_12] : memref<1x256xf32, #tpu.memory_space<vmem>>, vector<1x256xf32>
    %24 = vector.broadcast %23 : vector<1x256xf32> to vector<16x256xf32>
    %25 = arith.addf %22, %24 : vector<16x256xf32>
    %c0_13 = arith.constant 0 : index
    %c0_14 = arith.constant 0 : index
    %26 = vector.load %arg4[%c0_13, %c0_14] : memref<4x32xf32, #tpu.memory_space<vmem>>, vector<1x32xf32>
    %27 = vector.shape_cast %26 : vector<1x32xf32> to vector<1x32xf32>
    %28 = vector.broadcast %27 : vector<1x32xf32> to vector<2x32xf32>
    %c1 = arith.constant 1 : index
    %c0_15 = arith.constant 0 : index
    %29 = vector.load %arg4[%c1, %c0_15] : memref<4x32xf32, #tpu.memory_space<vmem>>, vector<1x32xf32>
    %30 = vector.shape_cast %29 : vector<1x32xf32> to vector<1x32xf32>
    %31 = vector.broadcast %30 : vector<1x32xf32> to vector<2x32xf32>
    %c2 = arith.constant 2 : index
    %c0_16 = arith.constant 0 : index
    %32 = vector.load %arg4[%c2, %c0_16] : memref<4x32xf32, #tpu.memory_space<vmem>>, vector<1x32xf32>
    %33 = vector.shape_cast %32 : vector<1x32xf32> to vector<1x32xf32>
    %34 = vector.broadcast %33 : vector<1x32xf32> to vector<2x32xf32>
    %c3 = arith.constant 3 : index
    %c0_17 = arith.constant 0 : index
    %35 = vector.load %arg4[%c3, %c0_17] : memref<4x32xf32, #tpu.memory_space<vmem>>, vector<1x32xf32>
    %36 = vector.shape_cast %35 : vector<1x32xf32> to vector<1x32xf32>
    %37 = vector.broadcast %36 : vector<1x32xf32> to vector<2x32xf32>
    %cst_18 = arith.constant 0.000000e+00 : f32
    %38 = vector.broadcast %cst_18 : f32 to vector<2x32xf32>
    %39 = vector.extract_strided_slice %25 {offsets = [0, 0], sizes = [2, 128], strides = [1, 1]} : vector<16x256xf32> to vector<2x128xf32>
    %40 = vector.extract_strided_slice %25 {offsets = [14, 128], sizes = [2, 128], strides = [1, 1]} : vector<16x256xf32> to vector<2x128xf32>
    %41 = vector.extract_strided_slice %39 {offsets = [0, 0], sizes = [2, 32], strides = [1, 1]} : vector<2x128xf32> to vector<2x32xf32>
    %42 = vector.extract_strided_slice %39 {offsets = [0, 32], sizes = [2, 32], strides = [1, 1]} : vector<2x128xf32> to vector<2x32xf32>
    %43 = vector.extract_strided_slice %39 {offsets = [0, 64], sizes = [2, 32], strides = [1, 1]} : vector<2x128xf32> to vector<2x32xf32>
    %44 = arith.mulf %28, %38 : vector<2x32xf32>
    %45 = arith.addf %43, %44 : vector<2x32xf32>
    %46 = arith.negf %45 : vector<2x32xf32>
    %47 = math.exp %46 : vector<2x32xf32>
    %cst_19 = arith.constant 1.000000e+00 : f32
    %48 = vector.broadcast %cst_19 : f32 to vector<2x32xf32>
    %49 = arith.addf %48, %47 : vector<2x32xf32>
    %50 = arith.divf %48, %49 : vector<2x32xf32>
    %51 = vector.extract_strided_slice %39 {offsets = [0, 96], sizes = [2, 32], strides = [1, 1]} : vector<2x128xf32> to vector<2x32xf32>
    %52 = arith.mulf %31, %38 : vector<2x32xf32>
    %53 = arith.addf %51, %52 : vector<2x32xf32>
    %54 = arith.negf %53 : vector<2x32xf32>
    %55 = math.exp %54 : vector<2x32xf32>
    %cst_20 = arith.constant 1.000000e+00 : f32
    %56 = vector.broadcast %cst_20 : f32 to vector<2x32xf32>
    %57 = arith.addf %56, %55 : vector<2x32xf32>
    %58 = arith.divf %56, %57 : vector<2x32xf32>
    %59 = arith.subf %38, %41 : vector<2x32xf32>
    %60 = arith.mulf %50, %59 : vector<2x32xf32>
    %61 = arith.addf %60, %41 : vector<2x32xf32>
    %62 = arith.subf %61, %42 : vector<2x32xf32>
    %63 = arith.mulf %58, %62 : vector<2x32xf32>
    %64 = arith.addf %63, %42 : vector<2x32xf32>
    %65 = vector.extract_strided_slice %40 {offsets = [0, 0], sizes = [2, 32], strides = [1, 1]} : vector<2x128xf32> to vector<2x32xf32>
    %66 = vector.extract_strided_slice %40 {offsets = [0, 32], sizes = [2, 32], strides = [1, 1]} : vector<2x128xf32> to vector<2x32xf32>
    %67 = vector.extract_strided_slice %40 {offsets = [0, 64], sizes = [2, 32], strides = [1, 1]} : vector<2x128xf32> to vector<2x32xf32>
    %68 = arith.mulf %34, %38 : vector<2x32xf32>
    %69 = arith.addf %67, %68 : vector<2x32xf32>
    %70 = arith.negf %69 : vector<2x32xf32>
    %71 = math.exp %70 : vector<2x32xf32>
    %cst_21 = arith.constant 1.000000e+00 : f32
    %72 = vector.broadcast %cst_21 : f32 to vector<2x32xf32>
    %73 = arith.addf %72, %71 : vector<2x32xf32>
    %74 = arith.divf %72, %73 : vector<2x32xf32>
    %75 = vector.extract_strided_slice %40 {offsets = [0, 96], sizes = [2, 32], strides = [1, 1]} : vector<2x128xf32> to vector<2x32xf32>
    %76 = arith.mulf %37, %38 : vector<2x32xf32>
    %77 = arith.addf %75, %76 : vector<2x32xf32>
    %78 = arith.negf %77 : vector<2x32xf32>
    %79 = math.exp %78 : vector<2x32xf32>
    %cst_22 = arith.constant 1.000000e+00 : f32
    %80 = vector.broadcast %cst_22 : f32 to vector<2x32xf32>
    %81 = arith.addf %80, %79 : vector<2x32xf32>
    %82 = arith.divf %80, %81 : vector<2x32xf32>
    %83 = arith.subf %38, %65 : vector<2x32xf32>
    %84 = arith.mulf %74, %83 : vector<2x32xf32>
    %85 = arith.addf %84, %65 : vector<2x32xf32>
    %86 = arith.subf %85, %66 : vector<2x32xf32>
    %87 = arith.mulf %82, %86 : vector<2x32xf32>
    %88 = arith.addf %87, %66 : vector<2x32xf32>
    %89 = vector.extract_strided_slice %25 {offsets = [2, 0], sizes = [2, 128], strides = [1, 1]} : vector<16x256xf32> to vector<2x128xf32>
    %90 = vector.extract_strided_slice %25 {offsets = [12, 128], sizes = [2, 128], strides = [1, 1]} : vector<16x256xf32> to vector<2x128xf32>
    %91 = vector.extract_strided_slice %89 {offsets = [0, 0], sizes = [2, 32], strides = [1, 1]} : vector<2x128xf32> to vector<2x32xf32>
    %92 = vector.extract_strided_slice %89 {offsets = [0, 32], sizes = [2, 32], strides = [1, 1]} : vector<2x128xf32> to vector<2x32xf32>
    %93 = vector.extract_strided_slice %89 {offsets = [0, 64], sizes = [2, 32], strides = [1, 1]} : vector<2x128xf32> to vector<2x32xf32>
    %94 = arith.mulf %28, %61 : vector<2x32xf32>
    %95 = arith.addf %93, %94 : vector<2x32xf32>
    %96 = arith.negf %95 : vector<2x32xf32>
    %97 = math.exp %96 : vector<2x32xf32>
    %cst_23 = arith.constant 1.000000e+00 : f32
    %98 = vector.broadcast %cst_23 : f32 to vector<2x32xf32>
    %99 = arith.addf %98, %97 : vector<2x32xf32>
    %100 = arith.divf %98, %99 : vector<2x32xf32>
    %101 = vector.extract_strided_slice %89 {offsets = [0, 96], sizes = [2, 32], strides = [1, 1]} : vector<2x128xf32> to vector<2x32xf32>
    %102 = arith.mulf %31, %61 : vector<2x32xf32>
    %103 = arith.addf %101, %102 : vector<2x32xf32>
    %104 = arith.negf %103 : vector<2x32xf32>
    %105 = math.exp %104 : vector<2x32xf32>
    %cst_24 = arith.constant 1.000000e+00 : f32
    %106 = vector.broadcast %cst_24 : f32 to vector<2x32xf32>
    %107 = arith.addf %106, %105 : vector<2x32xf32>
    %108 = arith.divf %106, %107 : vector<2x32xf32>
    %109 = arith.subf %61, %91 : vector<2x32xf32>
    %110 = arith.mulf %100, %109 : vector<2x32xf32>
    %111 = arith.addf %110, %91 : vector<2x32xf32>
    %112 = arith.subf %111, %92 : vector<2x32xf32>
    %113 = arith.mulf %108, %112 : vector<2x32xf32>
    %114 = arith.addf %113, %92 : vector<2x32xf32>
    %115 = vector.extract_strided_slice %90 {offsets = [0, 0], sizes = [2, 32], strides = [1, 1]} : vector<2x128xf32> to vector<2x32xf32>
    %116 = vector.extract_strided_slice %90 {offsets = [0, 32], sizes = [2, 32], strides = [1, 1]} : vector<2x128xf32> to vector<2x32xf32>
    %117 = vector.extract_strided_slice %90 {offsets = [0, 64], sizes = [2, 32], strides = [1, 1]} : vector<2x128xf32> to vector<2x32xf32>
    %118 = arith.mulf %34, %85 : vector<2x32xf32>
    %119 = arith.addf %117, %118 : vector<2x32xf32>
    %120 = arith.negf %119 : vector<2x32xf32>
    %121 = math.exp %120 : vector<2x32xf32>
    %cst_25 = arith.constant 1.000000e+00 : f32
    %122 = vector.broadcast %cst_25 : f32 to vector<2x32xf32>
    %123 = arith.addf %122, %121 : vector<2x32xf32>
    %124 = arith.divf %122, %123 : vector<2x32xf32>
    %125 = vector.extract_strided_slice %90 {offsets = [0, 96], sizes = [2, 32], strides = [1, 1]} : vector<2x128xf32> to vector<2x32xf32>
    %126 = arith.mulf %37, %85 : vector<2x32xf32>
    %127 = arith.addf %125, %126 : vector<2x32xf32>
    %128 = arith.negf %127 : vector<2x32xf32>
    %129 = math.exp %128 : vector<2x32xf32>
    %cst_26 = arith.constant 1.000000e+00 : f32
    %130 = vector.broadcast %cst_26 : f32 to vector<2x32xf32>
    %131 = arith.addf %130, %129 : vector<2x32xf32>
    %132 = arith.divf %130, %131 : vector<2x32xf32>
    %133 = arith.subf %85, %115 : vector<2x32xf32>
    %134 = arith.mulf %124, %133 : vector<2x32xf32>
    %135 = arith.addf %134, %115 : vector<2x32xf32>
    %136 = arith.subf %135, %116 : vector<2x32xf32>
    %137 = arith.mulf %132, %136 : vector<2x32xf32>
    %138 = arith.addf %137, %116 : vector<2x32xf32>
    %139 = vector.extract_strided_slice %25 {offsets = [4, 0], sizes = [2, 128], strides = [1, 1]} : vector<16x256xf32> to vector<2x128xf32>
    %140 = vector.extract_strided_slice %25 {offsets = [10, 128], sizes = [2, 128], strides = [1, 1]} : vector<16x256xf32> to vector<2x128xf32>
    %141 = vector.extract_strided_slice %139 {offsets = [0, 0], sizes = [2, 32], strides = [1, 1]} : vector<2x128xf32> to vector<2x32xf32>
    %142 = vector.extract_strided_slice %139 {offsets = [0, 32], sizes = [2, 32], strides = [1, 1]} : vector<2x128xf32> to vector<2x32xf32>
    %143 = vector.extract_strided_slice %139 {offsets = [0, 64], sizes = [2, 32], strides = [1, 1]} : vector<2x128xf32> to vector<2x32xf32>
    %144 = arith.mulf %28, %111 : vector<2x32xf32>
    %145 = arith.addf %143, %144 : vector<2x32xf32>
    %146 = arith.negf %145 : vector<2x32xf32>
    %147 = math.exp %146 : vector<2x32xf32>
    %cst_27 = arith.constant 1.000000e+00 : f32
    %148 = vector.broadcast %cst_27 : f32 to vector<2x32xf32>
    %149 = arith.addf %148, %147 : vector<2x32xf32>
    %150 = arith.divf %148, %149 : vector<2x32xf32>
    %151 = vector.extract_strided_slice %139 {offsets = [0, 96], sizes = [2, 32], strides = [1, 1]} : vector<2x128xf32> to vector<2x32xf32>
    %152 = arith.mulf %31, %111 : vector<2x32xf32>
    %153 = arith.addf %151, %152 : vector<2x32xf32>
    %154 = arith.negf %153 : vector<2x32xf32>
    %155 = math.exp %154 : vector<2x32xf32>
    %cst_28 = arith.constant 1.000000e+00 : f32
    %156 = vector.broadcast %cst_28 : f32 to vector<2x32xf32>
    %157 = arith.addf %156, %155 : vector<2x32xf32>
    %158 = arith.divf %156, %157 : vector<2x32xf32>
    %159 = arith.subf %111, %141 : vector<2x32xf32>
    %160 = arith.mulf %150, %159 : vector<2x32xf32>
    %161 = arith.addf %160, %141 : vector<2x32xf32>
    %162 = arith.subf %161, %142 : vector<2x32xf32>
    %163 = arith.mulf %158, %162 : vector<2x32xf32>
    %164 = arith.addf %163, %142 : vector<2x32xf32>
    %165 = vector.extract_strided_slice %140 {offsets = [0, 0], sizes = [2, 32], strides = [1, 1]} : vector<2x128xf32> to vector<2x32xf32>
    %166 = vector.extract_strided_slice %140 {offsets = [0, 32], sizes = [2, 32], strides = [1, 1]} : vector<2x128xf32> to vector<2x32xf32>
    %167 = vector.extract_strided_slice %140 {offsets = [0, 64], sizes = [2, 32], strides = [1, 1]} : vector<2x128xf32> to vector<2x32xf32>
    %168 = arith.mulf %34, %135 : vector<2x32xf32>
    %169 = arith.addf %167, %168 : vector<2x32xf32>
    %170 = arith.negf %169 : vector<2x32xf32>
    %171 = math.exp %170 : vector<2x32xf32>
    %cst_29 = arith.constant 1.000000e+00 : f32
    %172 = vector.broadcast %cst_29 : f32 to vector<2x32xf32>
    %173 = arith.addf %172, %171 : vector<2x32xf32>
    %174 = arith.divf %172, %173 : vector<2x32xf32>
    %175 = vector.extract_strided_slice %140 {offsets = [0, 96], sizes = [2, 32], strides = [1, 1]} : vector<2x128xf32> to vector<2x32xf32>
    %176 = arith.mulf %37, %135 : vector<2x32xf32>
    %177 = arith.addf %175, %176 : vector<2x32xf32>
    %178 = arith.negf %177 : vector<2x32xf32>
    %179 = math.exp %178 : vector<2x32xf32>
    %cst_30 = arith.constant 1.000000e+00 : f32
    %180 = vector.broadcast %cst_30 : f32 to vector<2x32xf32>
    %181 = arith.addf %180, %179 : vector<2x32xf32>
    %182 = arith.divf %180, %181 : vector<2x32xf32>
    %183 = arith.subf %135, %165 : vector<2x32xf32>
    %184 = arith.mulf %174, %183 : vector<2x32xf32>
    %185 = arith.addf %184, %165 : vector<2x32xf32>
    %186 = arith.subf %185, %166 : vector<2x32xf32>
    %187 = arith.mulf %182, %186 : vector<2x32xf32>
    %188 = arith.addf %187, %166 : vector<2x32xf32>
    %189 = vector.extract_strided_slice %25 {offsets = [6, 0], sizes = [2, 128], strides = [1, 1]} : vector<16x256xf32> to vector<2x128xf32>
    %190 = vector.extract_strided_slice %25 {offsets = [8, 128], sizes = [2, 128], strides = [1, 1]} : vector<16x256xf32> to vector<2x128xf32>
    %191 = vector.extract_strided_slice %189 {offsets = [0, 0], sizes = [2, 32], strides = [1, 1]} : vector<2x128xf32> to vector<2x32xf32>
    %192 = vector.extract_strided_slice %189 {offsets = [0, 32], sizes = [2, 32], strides = [1, 1]} : vector<2x128xf32> to vector<2x32xf32>
    %193 = vector.extract_strided_slice %189 {offsets = [0, 64], sizes = [2, 32], strides = [1, 1]} : vector<2x128xf32> to vector<2x32xf32>
    %194 = arith.mulf %28, %161 : vector<2x32xf32>
    %195 = arith.addf %193, %194 : vector<2x32xf32>
    %196 = arith.negf %195 : vector<2x32xf32>
    %197 = math.exp %196 : vector<2x32xf32>
    %cst_31 = arith.constant 1.000000e+00 : f32
    %198 = vector.broadcast %cst_31 : f32 to vector<2x32xf32>
    %199 = arith.addf %198, %197 : vector<2x32xf32>
    %200 = arith.divf %198, %199 : vector<2x32xf32>
    %201 = vector.extract_strided_slice %189 {offsets = [0, 96], sizes = [2, 32], strides = [1, 1]} : vector<2x128xf32> to vector<2x32xf32>
    %202 = arith.mulf %31, %161 : vector<2x32xf32>
    %203 = arith.addf %201, %202 : vector<2x32xf32>
    %204 = arith.negf %203 : vector<2x32xf32>
    %205 = math.exp %204 : vector<2x32xf32>
    %cst_32 = arith.constant 1.000000e+00 : f32
    %206 = vector.broadcast %cst_32 : f32 to vector<2x32xf32>
    %207 = arith.addf %206, %205 : vector<2x32xf32>
    %208 = arith.divf %206, %207 : vector<2x32xf32>
    %209 = arith.subf %161, %191 : vector<2x32xf32>
    %210 = arith.mulf %200, %209 : vector<2x32xf32>
    %211 = arith.addf %210, %191 : vector<2x32xf32>
    %212 = arith.subf %211, %192 : vector<2x32xf32>
    %213 = arith.mulf %208, %212 : vector<2x32xf32>
    %214 = arith.addf %213, %192 : vector<2x32xf32>
    %215 = vector.extract_strided_slice %190 {offsets = [0, 0], sizes = [2, 32], strides = [1, 1]} : vector<2x128xf32> to vector<2x32xf32>
    %216 = vector.extract_strided_slice %190 {offsets = [0, 32], sizes = [2, 32], strides = [1, 1]} : vector<2x128xf32> to vector<2x32xf32>
    %217 = vector.extract_strided_slice %190 {offsets = [0, 64], sizes = [2, 32], strides = [1, 1]} : vector<2x128xf32> to vector<2x32xf32>
    %218 = arith.mulf %34, %185 : vector<2x32xf32>
    %219 = arith.addf %217, %218 : vector<2x32xf32>
    %220 = arith.negf %219 : vector<2x32xf32>
    %221 = math.exp %220 : vector<2x32xf32>
    %cst_33 = arith.constant 1.000000e+00 : f32
    %222 = vector.broadcast %cst_33 : f32 to vector<2x32xf32>
    %223 = arith.addf %222, %221 : vector<2x32xf32>
    %224 = arith.divf %222, %223 : vector<2x32xf32>
    %225 = vector.extract_strided_slice %190 {offsets = [0, 96], sizes = [2, 32], strides = [1, 1]} : vector<2x128xf32> to vector<2x32xf32>
    %226 = arith.mulf %37, %185 : vector<2x32xf32>
    %227 = arith.addf %225, %226 : vector<2x32xf32>
    %228 = arith.negf %227 : vector<2x32xf32>
    %229 = math.exp %228 : vector<2x32xf32>
    %cst_34 = arith.constant 1.000000e+00 : f32
    %230 = vector.broadcast %cst_34 : f32 to vector<2x32xf32>
    %231 = arith.addf %230, %229 : vector<2x32xf32>
    %232 = arith.divf %230, %231 : vector<2x32xf32>
    %233 = arith.subf %185, %215 : vector<2x32xf32>
    %234 = arith.mulf %224, %233 : vector<2x32xf32>
    %235 = arith.addf %234, %215 : vector<2x32xf32>
    %236 = arith.subf %235, %216 : vector<2x32xf32>
    %237 = arith.mulf %232, %236 : vector<2x32xf32>
    %238 = arith.addf %237, %216 : vector<2x32xf32>
    %239 = vector.extract_strided_slice %25 {offsets = [8, 0], sizes = [2, 128], strides = [1, 1]} : vector<16x256xf32> to vector<2x128xf32>
    %240 = vector.extract_strided_slice %25 {offsets = [6, 128], sizes = [2, 128], strides = [1, 1]} : vector<16x256xf32> to vector<2x128xf32>
    %241 = vector.extract_strided_slice %239 {offsets = [0, 0], sizes = [2, 32], strides = [1, 1]} : vector<2x128xf32> to vector<2x32xf32>
    %242 = vector.extract_strided_slice %239 {offsets = [0, 32], sizes = [2, 32], strides = [1, 1]} : vector<2x128xf32> to vector<2x32xf32>
    %243 = vector.extract_strided_slice %239 {offsets = [0, 64], sizes = [2, 32], strides = [1, 1]} : vector<2x128xf32> to vector<2x32xf32>
    %244 = arith.mulf %28, %211 : vector<2x32xf32>
    %245 = arith.addf %243, %244 : vector<2x32xf32>
    %246 = arith.negf %245 : vector<2x32xf32>
    %247 = math.exp %246 : vector<2x32xf32>
    %cst_35 = arith.constant 1.000000e+00 : f32
    %248 = vector.broadcast %cst_35 : f32 to vector<2x32xf32>
    %249 = arith.addf %248, %247 : vector<2x32xf32>
    %250 = arith.divf %248, %249 : vector<2x32xf32>
    %251 = vector.extract_strided_slice %239 {offsets = [0, 96], sizes = [2, 32], strides = [1, 1]} : vector<2x128xf32> to vector<2x32xf32>
    %252 = arith.mulf %31, %211 : vector<2x32xf32>
    %253 = arith.addf %251, %252 : vector<2x32xf32>
    %254 = arith.negf %253 : vector<2x32xf32>
    %255 = math.exp %254 : vector<2x32xf32>
    %cst_36 = arith.constant 1.000000e+00 : f32
    %256 = vector.broadcast %cst_36 : f32 to vector<2x32xf32>
    %257 = arith.addf %256, %255 : vector<2x32xf32>
    %258 = arith.divf %256, %257 : vector<2x32xf32>
    %259 = arith.subf %211, %241 : vector<2x32xf32>
    %260 = arith.mulf %250, %259 : vector<2x32xf32>
    %261 = arith.addf %260, %241 : vector<2x32xf32>
    %262 = arith.subf %261, %242 : vector<2x32xf32>
    %263 = arith.mulf %258, %262 : vector<2x32xf32>
    %264 = arith.addf %263, %242 : vector<2x32xf32>
    %265 = vector.extract_strided_slice %240 {offsets = [0, 0], sizes = [2, 32], strides = [1, 1]} : vector<2x128xf32> to vector<2x32xf32>
    %266 = vector.extract_strided_slice %240 {offsets = [0, 32], sizes = [2, 32], strides = [1, 1]} : vector<2x128xf32> to vector<2x32xf32>
    %267 = vector.extract_strided_slice %240 {offsets = [0, 64], sizes = [2, 32], strides = [1, 1]} : vector<2x128xf32> to vector<2x32xf32>
    %268 = arith.mulf %34, %235 : vector<2x32xf32>
    %269 = arith.addf %267, %268 : vector<2x32xf32>
    %270 = arith.negf %269 : vector<2x32xf32>
    %271 = math.exp %270 : vector<2x32xf32>
    %cst_37 = arith.constant 1.000000e+00 : f32
    %272 = vector.broadcast %cst_37 : f32 to vector<2x32xf32>
    %273 = arith.addf %272, %271 : vector<2x32xf32>
    %274 = arith.divf %272, %273 : vector<2x32xf32>
    %275 = vector.extract_strided_slice %240 {offsets = [0, 96], sizes = [2, 32], strides = [1, 1]} : vector<2x128xf32> to vector<2x32xf32>
    %276 = arith.mulf %37, %235 : vector<2x32xf32>
    %277 = arith.addf %275, %276 : vector<2x32xf32>
    %278 = arith.negf %277 : vector<2x32xf32>
    %279 = math.exp %278 : vector<2x32xf32>
    %cst_38 = arith.constant 1.000000e+00 : f32
    %280 = vector.broadcast %cst_38 : f32 to vector<2x32xf32>
    %281 = arith.addf %280, %279 : vector<2x32xf32>
    %282 = arith.divf %280, %281 : vector<2x32xf32>
    %283 = arith.subf %235, %265 : vector<2x32xf32>
    %284 = arith.mulf %274, %283 : vector<2x32xf32>
    %285 = arith.addf %284, %265 : vector<2x32xf32>
    %286 = arith.subf %285, %266 : vector<2x32xf32>
    %287 = arith.mulf %282, %286 : vector<2x32xf32>
    %288 = arith.addf %287, %266 : vector<2x32xf32>
    %289 = vector.extract_strided_slice %25 {offsets = [10, 0], sizes = [2, 128], strides = [1, 1]} : vector<16x256xf32> to vector<2x128xf32>
    %290 = vector.extract_strided_slice %25 {offsets = [4, 128], sizes = [2, 128], strides = [1, 1]} : vector<16x256xf32> to vector<2x128xf32>
    %291 = vector.extract_strided_slice %289 {offsets = [0, 0], sizes = [2, 32], strides = [1, 1]} : vector<2x128xf32> to vector<2x32xf32>
    %292 = vector.extract_strided_slice %289 {offsets = [0, 32], sizes = [2, 32], strides = [1, 1]} : vector<2x128xf32> to vector<2x32xf32>
    %293 = vector.extract_strided_slice %289 {offsets = [0, 64], sizes = [2, 32], strides = [1, 1]} : vector<2x128xf32> to vector<2x32xf32>
    %294 = arith.mulf %28, %261 : vector<2x32xf32>
    %295 = arith.addf %293, %294 : vector<2x32xf32>
    %296 = arith.negf %295 : vector<2x32xf32>
    %297 = math.exp %296 : vector<2x32xf32>
    %cst_39 = arith.constant 1.000000e+00 : f32
    %298 = vector.broadcast %cst_39 : f32 to vector<2x32xf32>
    %299 = arith.addf %298, %297 : vector<2x32xf32>
    %300 = arith.divf %298, %299 : vector<2x32xf32>
    %301 = vector.extract_strided_slice %289 {offsets = [0, 96], sizes = [2, 32], strides = [1, 1]} : vector<2x128xf32> to vector<2x32xf32>
    %302 = arith.mulf %31, %261 : vector<2x32xf32>
    %303 = arith.addf %301, %302 : vector<2x32xf32>
    %304 = arith.negf %303 : vector<2x32xf32>
    %305 = math.exp %304 : vector<2x32xf32>
    %cst_40 = arith.constant 1.000000e+00 : f32
    %306 = vector.broadcast %cst_40 : f32 to vector<2x32xf32>
    %307 = arith.addf %306, %305 : vector<2x32xf32>
    %308 = arith.divf %306, %307 : vector<2x32xf32>
    %309 = arith.subf %261, %291 : vector<2x32xf32>
    %310 = arith.mulf %300, %309 : vector<2x32xf32>
    %311 = arith.addf %310, %291 : vector<2x32xf32>
    %312 = arith.subf %311, %292 : vector<2x32xf32>
    %313 = arith.mulf %308, %312 : vector<2x32xf32>
    %314 = arith.addf %313, %292 : vector<2x32xf32>
    %315 = vector.extract_strided_slice %290 {offsets = [0, 0], sizes = [2, 32], strides = [1, 1]} : vector<2x128xf32> to vector<2x32xf32>
    %316 = vector.extract_strided_slice %290 {offsets = [0, 32], sizes = [2, 32], strides = [1, 1]} : vector<2x128xf32> to vector<2x32xf32>
    %317 = vector.extract_strided_slice %290 {offsets = [0, 64], sizes = [2, 32], strides = [1, 1]} : vector<2x128xf32> to vector<2x32xf32>
    %318 = arith.mulf %34, %285 : vector<2x32xf32>
    %319 = arith.addf %317, %318 : vector<2x32xf32>
    %320 = arith.negf %319 : vector<2x32xf32>
    %321 = math.exp %320 : vector<2x32xf32>
    %cst_41 = arith.constant 1.000000e+00 : f32
    %322 = vector.broadcast %cst_41 : f32 to vector<2x32xf32>
    %323 = arith.addf %322, %321 : vector<2x32xf32>
    %324 = arith.divf %322, %323 : vector<2x32xf32>
    %325 = vector.extract_strided_slice %290 {offsets = [0, 96], sizes = [2, 32], strides = [1, 1]} : vector<2x128xf32> to vector<2x32xf32>
    %326 = arith.mulf %37, %285 : vector<2x32xf32>
    %327 = arith.addf %325, %326 : vector<2x32xf32>
    %328 = arith.negf %327 : vector<2x32xf32>
    %329 = math.exp %328 : vector<2x32xf32>
    %cst_42 = arith.constant 1.000000e+00 : f32
    %330 = vector.broadcast %cst_42 : f32 to vector<2x32xf32>
    %331 = arith.addf %330, %329 : vector<2x32xf32>
    %332 = arith.divf %330, %331 : vector<2x32xf32>
    %333 = arith.subf %285, %315 : vector<2x32xf32>
    %334 = arith.mulf %324, %333 : vector<2x32xf32>
    %335 = arith.addf %334, %315 : vector<2x32xf32>
    %336 = arith.subf %335, %316 : vector<2x32xf32>
    %337 = arith.mulf %332, %336 : vector<2x32xf32>
    %338 = arith.addf %337, %316 : vector<2x32xf32>
    %339 = vector.extract_strided_slice %25 {offsets = [12, 0], sizes = [2, 128], strides = [1, 1]} : vector<16x256xf32> to vector<2x128xf32>
    %340 = vector.extract_strided_slice %25 {offsets = [2, 128], sizes = [2, 128], strides = [1, 1]} : vector<16x256xf32> to vector<2x128xf32>
    %341 = vector.extract_strided_slice %339 {offsets = [0, 0], sizes = [2, 32], strides = [1, 1]} : vector<2x128xf32> to vector<2x32xf32>
    %342 = vector.extract_strided_slice %339 {offsets = [0, 32], sizes = [2, 32], strides = [1, 1]} : vector<2x128xf32> to vector<2x32xf32>
    %343 = vector.extract_strided_slice %339 {offsets = [0, 64], sizes = [2, 32], strides = [1, 1]} : vector<2x128xf32> to vector<2x32xf32>
    %344 = arith.mulf %28, %311 : vector<2x32xf32>
    %345 = arith.addf %343, %344 : vector<2x32xf32>
    %346 = arith.negf %345 : vector<2x32xf32>
    %347 = math.exp %346 : vector<2x32xf32>
    %cst_43 = arith.constant 1.000000e+00 : f32
    %348 = vector.broadcast %cst_43 : f32 to vector<2x32xf32>
    %349 = arith.addf %348, %347 : vector<2x32xf32>
    %350 = arith.divf %348, %349 : vector<2x32xf32>
    %351 = vector.extract_strided_slice %339 {offsets = [0, 96], sizes = [2, 32], strides = [1, 1]} : vector<2x128xf32> to vector<2x32xf32>
    %352 = arith.mulf %31, %311 : vector<2x32xf32>
    %353 = arith.addf %351, %352 : vector<2x32xf32>
    %354 = arith.negf %353 : vector<2x32xf32>
    %355 = math.exp %354 : vector<2x32xf32>
    %cst_44 = arith.constant 1.000000e+00 : f32
    %356 = vector.broadcast %cst_44 : f32 to vector<2x32xf32>
    %357 = arith.addf %356, %355 : vector<2x32xf32>
    %358 = arith.divf %356, %357 : vector<2x32xf32>
    %359 = arith.subf %311, %341 : vector<2x32xf32>
    %360 = arith.mulf %350, %359 : vector<2x32xf32>
    %361 = arith.addf %360, %341 : vector<2x32xf32>
    %362 = arith.subf %361, %342 : vector<2x32xf32>
    %363 = arith.mulf %358, %362 : vector<2x32xf32>
    %364 = arith.addf %363, %342 : vector<2x32xf32>
    %365 = vector.extract_strided_slice %340 {offsets = [0, 0], sizes = [2, 32], strides = [1, 1]} : vector<2x128xf32> to vector<2x32xf32>
    %366 = vector.extract_strided_slice %340 {offsets = [0, 32], sizes = [2, 32], strides = [1, 1]} : vector<2x128xf32> to vector<2x32xf32>
    %367 = vector.extract_strided_slice %340 {offsets = [0, 64], sizes = [2, 32], strides = [1, 1]} : vector<2x128xf32> to vector<2x32xf32>
    %368 = arith.mulf %34, %335 : vector<2x32xf32>
    %369 = arith.addf %367, %368 : vector<2x32xf32>
    %370 = arith.negf %369 : vector<2x32xf32>
    %371 = math.exp %370 : vector<2x32xf32>
    %cst_45 = arith.constant 1.000000e+00 : f32
    %372 = vector.broadcast %cst_45 : f32 to vector<2x32xf32>
    %373 = arith.addf %372, %371 : vector<2x32xf32>
    %374 = arith.divf %372, %373 : vector<2x32xf32>
    %375 = vector.extract_strided_slice %340 {offsets = [0, 96], sizes = [2, 32], strides = [1, 1]} : vector<2x128xf32> to vector<2x32xf32>
    %376 = arith.mulf %37, %335 : vector<2x32xf32>
    %377 = arith.addf %375, %376 : vector<2x32xf32>
    %378 = arith.negf %377 : vector<2x32xf32>
    %379 = math.exp %378 : vector<2x32xf32>
    %cst_46 = arith.constant 1.000000e+00 : f32
    %380 = vector.broadcast %cst_46 : f32 to vector<2x32xf32>
    %381 = arith.addf %380, %379 : vector<2x32xf32>
    %382 = arith.divf %380, %381 : vector<2x32xf32>
    %383 = arith.subf %335, %365 : vector<2x32xf32>
    %384 = arith.mulf %374, %383 : vector<2x32xf32>
    %385 = arith.addf %384, %365 : vector<2x32xf32>
    %386 = arith.subf %385, %366 : vector<2x32xf32>
    %387 = arith.mulf %382, %386 : vector<2x32xf32>
    %388 = arith.addf %387, %366 : vector<2x32xf32>
    %389 = vector.extract_strided_slice %25 {offsets = [14, 0], sizes = [2, 128], strides = [1, 1]} : vector<16x256xf32> to vector<2x128xf32>
    %390 = vector.extract_strided_slice %25 {offsets = [0, 128], sizes = [2, 128], strides = [1, 1]} : vector<16x256xf32> to vector<2x128xf32>
    %391 = vector.extract_strided_slice %389 {offsets = [0, 0], sizes = [2, 32], strides = [1, 1]} : vector<2x128xf32> to vector<2x32xf32>
    %392 = vector.extract_strided_slice %389 {offsets = [0, 32], sizes = [2, 32], strides = [1, 1]} : vector<2x128xf32> to vector<2x32xf32>
    %393 = vector.extract_strided_slice %389 {offsets = [0, 64], sizes = [2, 32], strides = [1, 1]} : vector<2x128xf32> to vector<2x32xf32>
    %394 = arith.mulf %28, %361 : vector<2x32xf32>
    %395 = arith.addf %393, %394 : vector<2x32xf32>
    %396 = arith.negf %395 : vector<2x32xf32>
    %397 = math.exp %396 : vector<2x32xf32>
    %cst_47 = arith.constant 1.000000e+00 : f32
    %398 = vector.broadcast %cst_47 : f32 to vector<2x32xf32>
    %399 = arith.addf %398, %397 : vector<2x32xf32>
    %400 = arith.divf %398, %399 : vector<2x32xf32>
    %401 = vector.extract_strided_slice %389 {offsets = [0, 96], sizes = [2, 32], strides = [1, 1]} : vector<2x128xf32> to vector<2x32xf32>
    %402 = arith.mulf %31, %361 : vector<2x32xf32>
    %403 = arith.addf %401, %402 : vector<2x32xf32>
    %404 = arith.negf %403 : vector<2x32xf32>
    %405 = math.exp %404 : vector<2x32xf32>
    %cst_48 = arith.constant 1.000000e+00 : f32
    %406 = vector.broadcast %cst_48 : f32 to vector<2x32xf32>
    %407 = arith.addf %406, %405 : vector<2x32xf32>
    %408 = arith.divf %406, %407 : vector<2x32xf32>
    %409 = arith.subf %361, %391 : vector<2x32xf32>
    %410 = arith.mulf %400, %409 : vector<2x32xf32>
    %411 = arith.addf %410, %391 : vector<2x32xf32>
    %412 = arith.subf %411, %392 : vector<2x32xf32>
    %413 = arith.mulf %408, %412 : vector<2x32xf32>
    %414 = arith.addf %413, %392 : vector<2x32xf32>
    %415 = vector.extract_strided_slice %390 {offsets = [0, 0], sizes = [2, 32], strides = [1, 1]} : vector<2x128xf32> to vector<2x32xf32>
    %416 = vector.extract_strided_slice %390 {offsets = [0, 32], sizes = [2, 32], strides = [1, 1]} : vector<2x128xf32> to vector<2x32xf32>
    %417 = vector.extract_strided_slice %390 {offsets = [0, 64], sizes = [2, 32], strides = [1, 1]} : vector<2x128xf32> to vector<2x32xf32>
    %418 = arith.mulf %34, %385 : vector<2x32xf32>
    %419 = arith.addf %417, %418 : vector<2x32xf32>
    %420 = arith.negf %419 : vector<2x32xf32>
    %421 = math.exp %420 : vector<2x32xf32>
    %cst_49 = arith.constant 1.000000e+00 : f32
    %422 = vector.broadcast %cst_49 : f32 to vector<2x32xf32>
    %423 = arith.addf %422, %421 : vector<2x32xf32>
    %424 = arith.divf %422, %423 : vector<2x32xf32>
    %425 = vector.extract_strided_slice %390 {offsets = [0, 96], sizes = [2, 32], strides = [1, 1]} : vector<2x128xf32> to vector<2x32xf32>
    %426 = arith.mulf %37, %385 : vector<2x32xf32>
    %427 = arith.addf %425, %426 : vector<2x32xf32>
    %428 = arith.negf %427 : vector<2x32xf32>
    %429 = math.exp %428 : vector<2x32xf32>
    %cst_50 = arith.constant 1.000000e+00 : f32
    %430 = vector.broadcast %cst_50 : f32 to vector<2x32xf32>
    %431 = arith.addf %430, %429 : vector<2x32xf32>
    %432 = arith.divf %430, %431 : vector<2x32xf32>
    %433 = arith.subf %385, %415 : vector<2x32xf32>
    %434 = arith.mulf %424, %433 : vector<2x32xf32>
    %435 = arith.addf %434, %415 : vector<2x32xf32>
    %436 = arith.subf %435, %416 : vector<2x32xf32>
    %437 = arith.mulf %432, %436 : vector<2x32xf32>
    %438 = arith.addf %437, %416 : vector<2x32xf32>
    %439 = tpu.concatenate %64, %114, %164, %214, %264, %314, %364, %414 in 0 : vector<2x32xf32>, vector<2x32xf32>, vector<2x32xf32>, vector<2x32xf32>, vector<2x32xf32>, vector<2x32xf32>, vector<2x32xf32>, vector<2x32xf32> -> vector<16x32xf32>
    %440 = tpu.concatenate %438, %388, %338, %288, %238, %188, %138, %88 in 0 : vector<2x32xf32>, vector<2x32xf32>, vector<2x32xf32>, vector<2x32xf32>, vector<2x32xf32>, vector<2x32xf32>, vector<2x32xf32>, vector<2x32xf32> -> vector<16x32xf32>
    %441 = tpu.concatenate %439, %440 in 1 : vector<16x32xf32>, vector<16x32xf32> -> vector<16x64xf32>
    %c0_51 = arith.constant 0 : index
    %c0_52 = arith.constant 0 : index
    %442 = vector.load %arg5[%c0_51, %c0_52] : memref<64x32xf32, #tpu.memory_space<vmem>>, vector<64x32xf32>
    %cst_53 = arith.constant dense<0.000000e+00> : vector<16x32xf32>
    %443 = tpu.matmul %441, %442, %cst_53 {dimension_numbers = #tpu.dot_dimension_numbers<[1], [0], [0], [1], [0, 0, 1, 1], [], []>} : vector<16x64xf32>, vector<64x32xf32>, vector<16x32xf32> -> vector<16x32xf32>
    %444 = arith.mulf %2, %443 : vector<16x32xf32>
    %c0_54 = arith.constant 0 : index
    %c0_55 = arith.constant 0 : index
    %445 = vector.load %arg6[%c0_54, %c0_55] : memref<32x16xf32, #tpu.memory_space<vmem>>, vector<32x16xf32>
    %cst_56 = arith.constant dense<0.000000e+00> : vector<16x16xf32>
    %446 = tpu.matmul %444, %445, %cst_56 {dimension_numbers = #tpu.dot_dimension_numbers<[1], [0], [0], [1], [0, 0, 1, 1], [], []>} : vector<16x32xf32>, vector<32x16xf32>, vector<16x16xf32> -> vector<16x16xf32>
    %447 = math.tanh %446 : vector<16x16xf32>
    %c0_57 = arith.constant 0 : index
    %c0_58 = arith.constant 0 : index
    %448 = vector.load %arg7[%c0_57, %c0_58] : memref<16x16xf32, #tpu.memory_space<vmem>>, vector<16x16xf32>
    tpu.vector_store %arg7[%c0_57, %c0_58], %447 {strides = array<i32>} : memref<16x16xf32, #tpu.memory_space<vmem>>, vector<16x16xf32>,
    return
  }
}

</mosaic_0001>

<llo_original>
// kernel: conv_bsru_forward.1
$region0: #{conv_bsru_forward.1}
  #allocation0 [shape = 'u32[]', space=smem, size = 0x4, offset = 0x4, fixed_abs, tag = 'smem constant byte address 0x4 - core index']
  #allocation1 [shape = 'u32[144,128]{1,0:T(1,128)}', space=vmem, size = 0x12000, scoped, tag = 'internal scratch']
  %s0 = inlined_call_operand.vmem [shape: f32[16,16], index: 0, kind: input, shape index: {}]
  %s1 = inlined_call_operand.vmem [shape: f32[16,32], index: 1, kind: input, shape index: {}]
  %s2 = inlined_call_operand.vmem [shape: f32[32,256], index: 2, kind: input, shape index: {}]
  %s3 = inlined_call_operand.vmem [shape: f32[1,256], index: 3, kind: input, shape index: {}]
  %s4 = inlined_call_operand.vmem [shape: f32[4,32], index: 4, kind: input, shape index: {}]
  %s5 = inlined_call_operand.vmem [shape: f32[64,32], index: 5, kind: input, shape index: {}]
  %s6 = inlined_call_operand.vmem [shape: f32[32,16], index: 6, kind: input, shape index: {}]
  %s7 = inlined_call_operand.vmem [shape: f32[16,16], index: 7, kind: output, shape index: {}]
  %s8 = sld [smem:[#allocation0]]
  $region38: #{conv_bsru_forward.1} parent=0
    _
  %s10 = ssub.s32 1, %s8
  %s11 = scalar_select 0, %s10, %s8
  // Predicated region
  $region2: #{conv_bsru_forward.1} parent=0 // pred_check
    _
  $region3: #{conv_bsru_forward.1} parent=0 // pred_check_branch
    %13 = sbr.rel (0) target = $region5
  $region4: #{conv_bsru_forward.1} parent=0 // pred_region
    _
  $region5: #{conv_bsru_forward.1} parent=0 // pred_fallthru
    _
  // Predicated region
  $region6: #{conv_bsru_forward.1} parent=0 // pred_check
    _
  $region7: #{conv_bsru_forward.1} parent=0 // pred_check_branch
    %15 = sbr.rel (0) target = $region9
  $region8: #{conv_bsru_forward.1} parent=0 // pred_region
    _
  $region9: #{conv_bsru_forward.1} parent=0 // pred_fallthru
    _
  // Predicated region
  $region10: #{conv_bsru_forward.1} parent=0 // pred_check
    _
  $region11: #{conv_bsru_forward.1} parent=0 // pred_check_branch
    %17 = sbr.rel (0) target = $region13
  $region12: #{conv_bsru_forward.1} parent=0 // pred_region
    _
  $region13: #{conv_bsru_forward.1} parent=0 // pred_fallthru
    _
  // Predicated region
  $region14: #{conv_bsru_forward.1} parent=0 // pred_check
    _
  $region15: #{conv_bsru_forward.1} parent=0 // pred_check_branch
    %19 = sbr.rel (0) target = $region17
  $region16: #{conv_bsru_forward.1} parent=0 // pred_region
    _
  $region17: #{conv_bsru_forward.1} parent=0 // pred_fallthru
    _
  // Predicated region
  $region18: #{conv_bsru_forward.1} parent=0 // pred_check
    _
  $region19: #{conv_bsru_forward.1} parent=0 // pred_check_branch
    %21 = sbr.rel (0) target = $region21
  $region20: #{conv_bsru_forward.1} parent=0 // pred_region
    _
  $region21: #{conv_bsru_forward.1} parent=0 // pred_fallthru
    _
  // Predicated region
  $region22: #{conv_bsru_forward.1} parent=0 // pred_check
    _
  $region23: #{conv_bsru_forward.1} parent=0 // pred_check_branch
    %23 = sbr.rel (0) target = $region25
  $region24: #{conv_bsru_forward.1} parent=0 // pred_region
    _
  $region25: #{conv_bsru_forward.1} parent=0 // pred_fallthru
    _
  // Predicated region
  $region26: #{conv_bsru_forward.1} parent=0 // pred_check
    _
  $region27: #{conv_bsru_forward.1} parent=0 // pred_check_branch
    %25 = sbr.rel (0) target = $region29
  $region28: #{conv_bsru_forward.1} parent=0 // pred_region
    _
  $region29: #{conv_bsru_forward.1} parent=0 // pred_fallthru
    _
  %v26 = vld [vmem:[%s0] sm:$0xff]
  %v27 = vld [vmem:[%s0 + $0x8] sm:$0xff]
  %v28 = vld [vmem:[%s1] sm:$0xff]
  %v29 = vld [vmem:[%s1 + $0x8] sm:$0xff]
  %vm30 = vcmask 130048
  %v32 = vsel %vm30, %v26, 0
  %v35 = vsel %vm30, %v27, 0
  %37 = vmatprep.subr.mxu0 0.0
  %38 = vmatpush1.msra.mxu0 %v28
  %39 = vmatprep.subr.mxu0 0.0
  %40 = vmatpush1.msra.mxu0 %v29
  %41 = vmatprep.subr.mxu0 0.0
  %42 = vmatpush1.msra.mxu0 0.0
  %43 = vmatprep.subr.mxu0 0.0
  %44 = vmatpush1.msra.mxu0 0.0
  %45 = vmatprep.subr.mxu0 0.0
  %46 = vmatpush1.msra.mxu0 0.0
  %47 = vmatprep.subr.mxu0 0.0
  %48 = vmatpush1.msra.mxu0 0.0
  %49 = vmatprep.subr.mxu0 0.0
  %50 = vmatpush1.msra.mxu0 0.0
  %51 = vmatprep.subr.mxu0 0.0
  %52 = vmatpush1.msra.mxu0 0.0
  %53 = vmatprep.subr.mxu0 0.0
  %54 = vmatpush1.msra.mxu0 0.0
  %55 = vmatprep.subr.mxu0 0.0
  %56 = vmatpush1.msra.mxu0 0.0
  %57 = vmatprep.subr.mxu0 0.0
  %58 = vmatpush1.msra.mxu0 0.0
  %59 = vmatprep.subr.mxu0 0.0
  %60 = vmatpush1.msra.mxu0 0.0
  %61 = vmatprep.subr.mxu0 0.0
  %62 = vmatpush1.msra.mxu0 0.0
  %63 = vmatprep.subr.mxu0 0.0
  %64 = vmatpush1.msra.mxu0 0.0
  %65 = vmatprep.subr.mxu0 0.0
  %66 = vmatpush1.msra.mxu0 0.0
  %67 = vmatprep.subr.mxu0 0.0
  %68 = vmatpush1.msra.mxu0 0.0
  %69 = vmatprep.subr.mxu0 0.0
  %70 = vmatpush1.msra.mxu0 0.0
  %71 = vmatprep.subr.mxu0 0.0
  %72 = vmatpush1.msra.mxu0 0.0
  %73 = vmatprep.subr.mxu0 0.0
  %74 = vmatpush1.msra.mxu0 0.0
  %75 = vmatprep.subr.mxu0 0.0
  %76 = vmatpush1.msra.mxu0 0.0
  %77 = vmatprep.subr.mxu0 0.0
  %78 = vmatpush1.msra.mxu0 0.0
  %79 = vmatprep.subr.mxu0 0.0
  %80 = vmatpush1.msra.mxu0 0.0
  %81 = vmatprep.subr.mxu0 0.0
  %82 = vmatpush1.msra.mxu0 0.0
  %83 = vmatprep.subr.mxu0 0.0
  %84 = vmatpush1.msra.mxu0 0.0
  %85 = vmatprep.subr.mxu0 0.0
  %86 = vmatpush1.msra.mxu0 0.0
  %87 = vmatprep.subr.mxu0 0.0
  %88 = vmatpush1.msra.mxu0 0.0
  %89 = vmatprep.subr.mxu0 0.0
  %90 = vmatpush1.msra.mxu0 0.0
  %91 = vmatprep.subr.mxu0 0.0
  %92 = vmatpush1.msra.mxu0 0.0
  %93 = vmatprep.subr.mxu0 0.0
  %94 = vmatpush1.msra.mxu0 0.0
  %95 = vmatprep.subr.mxu0 0.0
  %96 = vmatpush1.msra.mxu0 0.0
  %97 = vmatprep.subr.mxu0 0.0
  %98 = vmatpush1.msra.mxu0 0.0
  %99 = vmatprep.subr.mxu0 0.0
  %100 = vmatpush1.msra.mxu0 0.0
  %101 = vmatprep.mubr.f32.mxu0 0.0
  %102 = vmatmul.mubr.f32.gmra.mrb[0].mxu0 %v32
  %v103 = vpop.f32.mrb[0].mxu0
  %v104 = vadd.f32 0.0, %v103
  %v105 = vpop.f32.mrb[0].mxu0
  %106 = vmatprep.mubr.f32.mxu0 0.0
  %107 = vmatmul.mubr.f32.gmra.mrb[0].mxu0 %v35
  %v108 = vpop.f32.mrb[0].mxu0
  %v109 = vadd.f32 0.0, %v108
  %v110 = vpop.f32.mrb[0].mxu0
  %111 = vdwg.mxu0
  %vm112 = vcmask 261120
  %v113 = vsel %vm112, %v104, 0.0
  %114 = vadd.xlane.f32.xlu0 %v113
  %v115 = vpop.xlane.xlu0 %114
  %v116 = vsel %vm112, %v109, 0.0
  %117 = vadd.xlane.f32.xlu0 %v116
  %v118 = vpop.xlane.xlu0 %117
  %v119 = vrcp.pop 32.0
  %v120 = vmul.f32 %v115, %v119
  %v121 = vmul.f32 %v118, %v119
  %v122 = vsub.f32 %v104, %v120
  %v123 = vsub.f32 %v109, %v121
  %v124 = vmul.f32 %v122, %v122
  %v125 = vmul.f32 %v123, %v123
  %v126 = vsel %vm112, %v124, 0.0
  %127 = vadd.xlane.f32.xlu0 %v126
  %v128 = vpop.xlane.xlu0 %127
  %v129 = vsel %vm112, %v125, 0.0
  %130 = vadd.xlane.f32.xlu0 %v129
  %v131 = vpop.xlane.xlu0 %130
  %v132 = vmul.f32 %v128, %v119
  %v133 = vmul.f32 %v131, %v119
  %v134 = vadd.f32 %v132, 1e-05
  %v135 = vadd.f32 %v133, 1e-05
  %v136 = vrsqrt.pop %v134
  %v137 = vrsqrt.pop %v135
  %v138 = vmul.f32 %v122, %v136
  %v139 = vmul.f32 %v123, %v137
  %v140 = vld [vmem:[%s2] sm:$0xff]
  %v141 = vld [vmem:[%s2 + $0x8] sm:$0xff]
  %v142 = vld [vmem:[%s2 + $0x10] sm:$0xff]
  %v143 = vld [vmem:[%s2 + $0x18] sm:$0xff]
  %v144 = vld [vmem:[%s2 + $0x20] sm:$0xff]
  %v145 = vld [vmem:[%s2 + $0x28] sm:$0xff]
  %v146 = vld [vmem:[%s2 + $0x30] sm:$0xff]
  %v147 = vld [vmem:[%s2 + $0x38] sm:$0xff]
  %v148 = vld [vmem:[%s3] sm:$0x3]
  %v150 = vlaneseq
  %v151 = vshrl.u32 %v150, 7
  %v152 = vsub.s32 0, %v151
  %v153 = vrot.slane %v148, %v152
  %v154 = vlaneseq
  %v155 = vshrl.u32 %v154, 7
  %v156 = vsub.s32 1, %v155
  %v157 = vrot.slane %v148, %v156
  %v161 = vsel %vm112, %v138, 0
  %v164 = vsel %vm112, %v139, 0
  %166 = vmatprep.subr.mxu0 %v141
  %167 = vmatpush1.msra.mxu0 %v140
  %168 = vmatprep.subr.mxu0 %v143
  %169 = vmatpush1.msra.mxu0 %v142
  %170 = vmatprep.subr.mxu0 %v145
  %171 = vmatpush1.msra.mxu0 %v144
  %172 = vmatprep.subr.mxu0 %v147
  %173 = vmatpush1.msra.mxu0 %v146
  %174 = vmatprep.subr.mxu0 0.0
  %175 = vmatpush1.msra.mxu0 0.0
  %176 = vmatprep.subr.mxu0 0.0
  %177 = vmatpush1.msra.mxu0 0.0
  %178 = vmatprep.subr.mxu0 0.0
  %179 = vmatpush1.msra.mxu0 0.0
  %180 = vmatprep.subr.mxu0 0.0
  %181 = vmatpush1.msra.mxu0 0.0
  %182 = vmatprep.subr.mxu0 0.0
  %183 = vmatpush1.msra.mxu0 0.0
  %184 = vmatprep.subr.mxu0 0.0
  %185 = vmatpush1.msra.mxu0 0.0
  %186 = vmatprep.subr.mxu0 0.0
  %187 = vmatpush1.msra.mxu0 0.0
  %188 = vmatprep.subr.mxu0 0.0
  %189 = vmatpush1.msra.mxu0 0.0
  %190 = vmatprep.subr.mxu0 0.0
  %191 = vmatpush1.msra.mxu0 0.0
  %192 = vmatprep.subr.mxu0 0.0
  %193 = vmatpush1.msra.mxu0 0.0
  %194 = vmatprep.subr.mxu0 0.0
  %195 = vmatpush1.msra.mxu0 0.0
  %196 = vmatprep.subr.mxu0 0.0
  %197 = vmatpush1.msra.mxu0 0.0
  %198 = vmatprep.subr.mxu0 0.0
  %199 = vmatpush1.msra.mxu0 0.0
  %200 = vmatprep.subr.mxu0 0.0
  %201 = vmatpush1.msra.mxu0 0.0
  %202 = vmatprep.subr.mxu0 0.0
  %203 = vmatpush1.msra.mxu0 0.0
  %204 = vmatprep.subr.mxu0 0.0
  %205 = vmatpush1.msra.mxu0 0.0
  %206 = vmatprep.subr.mxu0 0.0
  %207 = vmatpush1.msra.mxu0 0.0
  %208 = vmatprep.subr.mxu0 0.0
  %209 = vmatpush1.msra.mxu0 0.0
  %210 = vmatprep.subr.mxu0 0.0
  %211 = vmatpush1.msra.mxu0 0.0
  %212 = vmatprep.subr.mxu0 0.0
  %213 = vmatpush1.msra.mxu0 0.0
  %214 = vmatprep.subr.mxu0 0.0
  %215 = vmatpush1.msra.mxu0 0.0
  %216 = vmatprep.subr.mxu0 0.0
  %217 = vmatpush1.msra.mxu0 0.0
  %218 = vmatprep.subr.mxu0 0.0
  %219 = vmatpush1.msra.mxu0 0.0
  %220 = vmatprep.subr.mxu0 0.0
  %221 = vmatpush1.msra.mxu0 0.0
  %222 = vmatprep.subr.mxu0 0.0
  %223 = vmatpush1.msra.mxu0 0.0
  %224 = vmatprep.subr.mxu0 0.0
  %225 = vmatpush1.msra.mxu0 0.0
  %226 = vmatprep.subr.mxu0 0.0
  %227 = vmatpush1.msra.mxu0 0.0
  %228 = vmatprep.subr.mxu0 0.0
  %229 = vmatpush1.msra.mxu0 0.0
  %230 = vmatprep.mubr.f32.mxu0 0.0
  %231 = vmatmul.mubr.f32.gmra.mrb[0].mxu0 %v161
  %v232 = vpop.f32.mrb[0].mxu0
  %v233 = vadd.f32 %v153, %v232
  %v234 = vpop.f32.mrb[0].mxu0
  %v235 = vadd.f32 %v157, %v234
  %236 = vmatprep.mubr.f32.mxu0 0.0
  %237 = vmatmul.mubr.f32.gmra.mrb[0].mxu0 %v164
  %v238 = vpop.f32.mrb[0].mxu0
  %v239 = vadd.f32 %v153, %v238
  %v240 = vpop.f32.mrb[0].mxu0
  %v241 = vadd.f32 %v157, %v240
  %242 = vdwg.mxu0
  %v243 = vld [vmem:[%s4] sm:$0x1]
  %v244 = vlaneseq
  %v245 = vshrl.u32 %v244, 7
  %v246 = vsub.s32 0, %v245
  %v247 = vrot.slane %v243, %v246
  %v248 = vld [vmem:[%s4 + $0x1] sm:$0x1]
  %v249 = vlaneseq
  %v250 = vshrl.u32 %v249, 7
  %v251 = vsub.s32 0, %v250
  %v252 = vrot.slane %v248, %v251
  %v253 = vld [vmem:[%s4 + $0x2] sm:$0x1]
  %v254 = vlaneseq
  %v255 = vshrl.u32 %v254, 7
  %v256 = vsub.s32 0, %v255
  %v257 = vrot.slane %v253, %v256
  %v258 = vld [vmem:[%s4 + $0x3] sm:$0x1]
  %v259 = vlaneseq
  %v260 = vshrl.u32 %v259, 7
  %v261 = vsub.s32 0, %v260
  %v262 = vrot.slane %v258, %v261
  %v263 = vmul.f32 %v247, 0.0
  %265 = vrot.lane.b32.xlu0 %v263, 64
  %v266 = vpop.permute.xlu0 %265
  %v268 = vadd.f32 %v233, %v266
  %v269 = vxor.u32 %v268, 2147483648
  %v270 = vmul.f32 %v269, 1.442695
  %v271 = vpow.pop %v270
  %v272 = vadd.f32 %v271, 1.0
  %v273 = vrcp.pop %v272
  %v274 = vmul.f32 1.0, %v273
  %v275 = vmul.f32 %v252, 0.0
  %277 = vrot.lane.b32.xlu0 %v275, 96
  %v278 = vpop.permute.xlu0 %277
  %v280 = vadd.f32 %v233, %v278
  %v281 = vxor.u32 %v280, 2147483648
  %v282 = vmul.f32 %v281, 1.442695
  %v283 = vpow.pop %v282
  %v284 = vadd.f32 %v283, 1.0
  %v285 = vrcp.pop %v284
  %v286 = vmul.f32 1.0, %v285
  %v287 = vsub.f32 0.0, %v233
  %289 = vrot.lane.b32.xlu0 %v287, 64
  %v290 = vpop.permute.xlu0 %289
  %v292 = vmul.f32 %v274, %v290
  %294 = vrot.lane.b32.xlu0 %v233, 64
  %v295 = vpop.permute.xlu0 %294
  %v297 = vadd.f32 %v292, %v295
  %298 = vrot.lane.b32.xlu0 %v233, 32
  %v299 = vpop.permute.xlu0 %298
  %v301 = vsub.f32 %v297, %v299
  %303 = vrot.lane.b32.xlu0 %v301, 32
  %v304 = vpop.permute.xlu0 %303
  %v306 = vmul.f32 %v286, %v304
  %v307 = vadd.f32 %v306, %v295
  %v308 = vmul.f32 %v257, 0.0
  %310 = vrot.lane.b32.xlu0 %v308, 64
  %v311 = vpop.permute.xlu0 %310
  %v313 = vadd.f32 %v241, %v311
  %v314 = vxor.u32 %v313, 2147483648
  %v315 = vmul.f32 %v314, 1.442695
  %v316 = vpow.pop %v315
  %v317 = vadd.f32 %v316, 1.0
  %v318 = vrcp.pop %v317
  %v319 = vmul.f32 1.0, %v318
  %v320 = vmul.f32 %v262, 0.0
  %322 = vrot.lane.b32.xlu0 %v320, 96
  %v323 = vpop.permute.xlu0 %322
  %v325 = vadd.f32 %v241, %v323
  %v326 = vxor.u32 %v325, 2147483648
  %v327 = vmul.f32 %v326, 1.442695
  %v328 = vpow.pop %v327
  %v329 = vadd.f32 %v328, 1.0
  %v330 = vrcp.pop %v329
  %v331 = vmul.f32 1.0, %v330
  %v332 = vsub.f32 0.0, %v241
  %334 = vrot.lane.b32.xlu0 %v332, 64
  %v335 = vpop.permute.xlu0 %334
  %v337 = vmul.f32 %v319, %v335
  %339 = vrot.lane.b32.xlu0 %v241, 64
  %v340 = vpop.permute.xlu0 %339
  %v342 = vadd.f32 %v337, %v340
  %343 = vrot.lane.b32.xlu0 %v241, 32
  %v344 = vpop.permute.xlu0 %343
  %v346 = vsub.f32 %v342, %v344
  %348 = vrot.lane.b32.xlu0 %v346, 32
  %v349 = vpop.permute.xlu0 %348
  %v351 = vmul.f32 %v331, %v349
  %v352 = vadd.f32 %v351, %v340
  %354 = vrot.lane.b32.xlu0 %v297, 64
  %v355 = vpop.permute.xlu0 %354
  %v357 = vmul.f32 %v247, %v355
  %v359 = vrot.slane %v357, 6
  %360 = vrot.lane.b32.xlu0 %v359, 64
  %v361 = vpop.permute.xlu0 %360
  %v363 = vadd.f32 %v233, %v361
  %v364 = vxor.u32 %v363, 2147483648
  %v365 = vmul.f32 %v364, 1.442695
  %v366 = vpow.pop %v365
  %v367 = vadd.f32 %v366, 1.0
  %v368 = vrcp.pop %v367
  %v369 = vmul.f32 1.0, %v368
  %v370 = vmul.f32 %v252, %v355
  %v372 = vrot.slane %v370, 6
  %373 = vrot.lane.b32.xlu0 %v372, 96
  %v374 = vpop.permute.xlu0 %373
  %v376 = vadd.f32 %v233, %v374
  %v377 = vxor.u32 %v376, 2147483648
  %v378 = vmul.f32 %v377, 1.442695
  %v379 = vpow.pop %v378
  %v380 = vadd.f32 %v379, 1.0
  %v381 = vrcp.pop %v380
  %v382 = vmul.f32 1.0, %v381
  %v383 = vrot.slane %v233, 2
  %384 = vrot.lane.b32.xlu0 %v383, 64
  %v385 = vpop.permute.xlu0 %384
  %v387 = vsub.f32 %v297, %v385
  %v389 = vrot.slane %v387, 6
  %v391 = vmul.f32 %v369, %v389
  %v392 = vadd.f32 %v391, %v295
  %v393 = vsub.f32 %v392, %v299
  %395 = vrot.lane.b32.xlu0 %v393, 32
  %v396 = vpop.permute.xlu0 %395
  %v398 = vmul.f32 %v382, %v396
  %v399 = vadd.f32 %v398, %v295
  %v401 = vrot.slane %v342, 6
  %402 = vrot.lane.b32.xlu0 %v401, 64
  %v403 = vpop.permute.xlu0 %402
  %v405 = vmul.f32 %v257, %v403
  %v407 = vrot.slane %v405, 4
  %408 = vrot.lane.b32.xlu0 %v407, 64
  %v409 = vpop.permute.xlu0 %408
  %v411 = vadd.f32 %v241, %v409
  %v412 = vxor.u32 %v411, 2147483648
  %v413 = vmul.f32 %v412, 1.442695
  %v414 = vpow.pop %v413
  %v415 = vadd.f32 %v414, 1.0
  %v416 = vrcp.pop %v415
  %v417 = vmul.f32 1.0, %v416
  %v418 = vmul.f32 %v262, %v403
  %v420 = vrot.slane %v418, 4
  %421 = vrot.lane.b32.xlu0 %v420, 96
  %v422 = vpop.permute.xlu0 %421
  %v424 = vadd.f32 %v241, %v422
  %v425 = vxor.u32 %v424, 2147483648
  %v426 = vmul.f32 %v425, 1.442695
  %v427 = vpow.pop %v426
  %v428 = vadd.f32 %v427, 1.0
  %v429 = vrcp.pop %v428
  %v430 = vmul.f32 1.0, %v429
  %v431 = vrot.slane %v241, 6
  %432 = vrot.lane.b32.xlu0 %v431, 64
  %v433 = vpop.permute.xlu0 %432
  %v435 = vsub.f32 %v342, %v433
  %v437 = vrot.slane %v435, 2
  %v439 = vmul.f32 %v417, %v437
  %v440 = vadd.f32 %v439, %v340
  %v441 = vsub.f32 %v440, %v344
  %443 = vrot.lane.b32.xlu0 %v441, 32
  %v444 = vpop.permute.xlu0 %443
  %v446 = vmul.f32 %v430, %v444
  %v447 = vadd.f32 %v446, %v340
  %v449 = vrot.slane %v392, 2
  %450 = vrot.lane.b32.xlu0 %v449, 64
  %v451 = vpop.permute.xlu0 %450
  %v453 = vmul.f32 %v247, %v451
  %v455 = vrot.slane %v453, 4
  %456 = vrot.lane.b32.xlu0 %v455, 64
  %v457 = vpop.permute.xlu0 %456
  %v459 = vadd.f32 %v233, %v457
  %v460 = vxor.u32 %v459, 2147483648
  %v461 = vmul.f32 %v460, 1.442695
  %v462 = vpow.pop %v461
  %v463 = vadd.f32 %v462, 1.0
  %v464 = vrcp.pop %v463
  %v465 = vmul.f32 1.0, %v464
  %v466 = vmul.f32 %v252, %v451
  %v468 = vrot.slane %v466, 4
  %469 = vrot.lane.b32.xlu0 %v468, 96
  %v470 = vpop.permute.xlu0 %469
  %v472 = vadd.f32 %v233, %v470
  %v473 = vxor.u32 %v472, 2147483648
  %v474 = vmul.f32 %v473, 1.442695
  %v475 = vpow.pop %v474
  %v476 = vadd.f32 %v475, 1.0
  %v477 = vrcp.pop %v476
  %v478 = vmul.f32 1.0, %v477
  %v479 = vsub.f32 %v392, %v385
  %v481 = vrot.slane %v479, 6
  %v483 = vmul.f32 %v465, %v481
  %v484 = vadd.f32 %v483, %v295
  %v485 = vsub.f32 %v484, %v299
  %487 = vrot.lane.b32.xlu0 %v485, 32
  %v488 = vpop.permute.xlu0 %487
  %v490 = vmul.f32 %v478, %v488
  %v491 = vadd.f32 %v490, %v295
  %v493 = vrot.slane %v440, 4
  %494 = vrot.lane.b32.xlu0 %v493, 64
  %v495 = vpop.permute.xlu0 %494
  %v497 = vmul.f32 %v257, %v495
  %v499 = vrot.slane %v497, 6
  %500 = vrot.lane.b32.xlu0 %v499, 64
  %v501 = vpop.permute.xlu0 %500
  %v503 = vadd.f32 %v241, %v501
  %v504 = vxor.u32 %v503, 2147483648
  %v505 = vmul.f32 %v504, 1.442695
  %v506 = vpow.pop %v505
  %v507 = vadd.f32 %v506, 1.0
  %v508 = vrcp.pop %v507
  %v509 = vmul.f32 1.0, %v508
  %v510 = vmul.f32 %v262, %v495
  %v512 = vrot.slane %v510, 6
  %513 = vrot.lane.b32.xlu0 %v512, 96
  %v514 = vpop.permute.xlu0 %513
  %v516 = vadd.f32 %v241, %v514
  %v517 = vxor.u32 %v516, 2147483648
  %v518 = vmul.f32 %v517, 1.442695
  %v519 = vpow.pop %v518
  %v520 = vadd.f32 %v519, 1.0
  %v521 = vrcp.pop %v520
  %v522 = vmul.f32 1.0, %v521
  %v523 = vsub.f32 %v440, %v433
  %v525 = vrot.slane %v523, 2
  %v527 = vmul.f32 %v509, %v525
  %v528 = vadd.f32 %v527, %v340
  %v529 = vsub.f32 %v528, %v344
  %531 = vrot.lane.b32.xlu0 %v529, 32
  %v532 = vpop.permute.xlu0 %531
  %v534 = vmul.f32 %v522, %v532
  %v535 = vadd.f32 %v534, %v340
  %v537 = vrot.slane %v484, 4
  %538 = vrot.lane.b32.xlu0 %v537, 64
  %v539 = vpop.permute.xlu0 %538
  %v541 = vmul.f32 %v247, %v539
  %v543 = vrot.slane %v541, 2
  %544 = vrot.lane.b32.xlu0 %v543, 64
  %v545 = vpop.permute.xlu0 %544
  %v547 = vadd.f32 %v233, %v545
  %v548 = vxor.u32 %v547, 2147483648
  %v549 = vmul.f32 %v548, 1.442695
  %v550 = vpow.pop %v549
  %v551 = vadd.f32 %v550, 1.0
  %v552 = vrcp.pop %v551
  %v553 = vmul.f32 1.0, %v552
  %v554 = vmul.f32 %v252, %v539
  %v556 = vrot.slane %v554, 2
  %557 = vrot.lane.b32.xlu0 %v556, 96
  %v558 = vpop.permute.xlu0 %557
  %v560 = vadd.f32 %v233, %v558
  %v561 = vxor.u32 %v560, 2147483648
  %v562 = vmul.f32 %v561, 1.442695
  %v563 = vpow.pop %v562
  %v564 = vadd.f32 %v563, 1.0
  %v565 = vrcp.pop %v564
  %v566 = vmul.f32 1.0, %v565
  %v567 = vsub.f32 %v484, %v385
  %v569 = vrot.slane %v567, 6
  %v571 = vmul.f32 %v553, %v569
  %v572 = vadd.f32 %v571, %v295
  %v573 = vsub.f32 %v572, %v299
  %575 = vrot.lane.b32.xlu0 %v573, 32
  %v576 = vpop.permute.xlu0 %575
  %v578 = vmul.f32 %v566, %v576
  %v579 = vadd.f32 %v578, %v295
  %v581 = vrot.slane %v528, 2
  %582 = vrot.lane.b32.xlu0 %v581, 64
  %v583 = vpop.permute.xlu0 %582
  %v585 = vmul.f32 %v257, %v583
  %587 = vrot.lane.b32.xlu0 %v585, 64
  %v588 = vpop.permute.xlu0 %587
  %v590 = vadd.f32 %v241, %v588
  %v591 = vxor.u32 %v590, 2147483648
  %v592 = vmul.f32 %v591, 1.442695
  %v593 = vpow.pop %v592
  %v594 = vadd.f32 %v593, 1.0
  %v595 = vrcp.pop %v594
  %v596 = vmul.f32 1.0, %v595
  %v597 = vmul.f32 %v262, %v583
  %599 = vrot.lane.b32.xlu0 %v597, 96
  %v600 = vpop.permute.xlu0 %599
  %v602 = vadd.f32 %v241, %v600
  %v603 = vxor.u32 %v602, 2147483648
  %v604 = vmul.f32 %v603, 1.442695
  %v605 = vpow.pop %v604
  %v606 = vadd.f32 %v605, 1.0
  %v607 = vrcp.pop %v606
  %v608 = vmul.f32 1.0, %v607
  %v609 = vsub.f32 %v528, %v433
  %v611 = vrot.slane %v609, 2
  %v613 = vmul.f32 %v596, %v611
  %v614 = vadd.f32 %v613, %v340
  %v615 = vsub.f32 %v614, %v344
  %617 = vrot.lane.b32.xlu0 %v615, 32
  %v618 = vpop.permute.xlu0 %617
  %v620 = vmul.f32 %v608, %v618
  %v621 = vadd.f32 %v620, %v340
  %v623 = vrot.slane %v572, 6
  %624 = vrot.lane.b32.xlu0 %v623, 64
  %v625 = vpop.permute.xlu0 %624
  %v627 = vmul.f32 %v247, %v625
  %629 = vrot.lane.b32.xlu0 %v627, 64
  %v630 = vpop.permute.xlu0 %629
  %v632 = vadd.f32 %v239, %v630
  %v633 = vxor.u32 %v632, 2147483648
  %v634 = vmul.f32 %v633, 1.442695
  %v635 = vpow.pop %v634
  %v636 = vadd.f32 %v635, 1.0
  %v637 = vrcp.pop %v636
  %v638 = vmul.f32 1.0, %v637
  %v639 = vmul.f32 %v252, %v625
  %641 = vrot.lane.b32.xlu0 %v639, 96
  %v642 = vpop.permute.xlu0 %641
  %v644 = vadd.f32 %v239, %v642
  %v645 = vxor.u32 %v644, 2147483648
  %v646 = vmul.f32 %v645, 1.442695
  %v647 = vpow.pop %v646
  %v648 = vadd.f32 %v647, 1.0
  %v649 = vrcp.pop %v648
  %v650 = vmul.f32 1.0, %v649
  %v652 = vrot.slane %v239, 2
  %653 = vrot.lane.b32.xlu0 %v652, 64
  %v654 = vpop.permute.xlu0 %653
  %v656 = vsub.f32 %v572, %v654
  %v658 = vrot.slane %v656, 6
  %v660 = vmul.f32 %v638, %v658
  %661 = vrot.lane.b32.xlu0 %v239, 64
  %v662 = vpop.permute.xlu0 %661
  %v664 = vadd.f32 %v660, %v662
  %665 = vrot.lane.b32.xlu0 %v239, 32
  %v666 = vpop.permute.xlu0 %665
  %v668 = vsub.f32 %v664, %v666
  %670 = vrot.lane.b32.xlu0 %v668, 32
  %v671 = vpop.permute.xlu0 %670
  %v673 = vmul.f32 %v650, %v671
  %v674 = vadd.f32 %v673, %v662
  %676 = vrot.lane.b32.xlu0 %v614, 64
  %v677 = vpop.permute.xlu0 %676
  %v679 = vmul.f32 %v257, %v677
  %v681 = vrot.slane %v679, 2
  %682 = vrot.lane.b32.xlu0 %v681, 64
  %v683 = vpop.permute.xlu0 %682
  %v685 = vadd.f32 %v235, %v683
  %v686 = vxor.u32 %v685, 2147483648
  %v687 = vmul.f32 %v686, 1.442695
  %v688 = vpow.pop %v687
  %v689 = vadd.f32 %v688, 1.0
  %v690 = vrcp.pop %v689
  %v691 = vmul.f32 1.0, %v690
  %v692 = vmul.f32 %v262, %v677
  %v694 = vrot.slane %v692, 2
  %695 = vrot.lane.b32.xlu0 %v694, 96
  %v696 = vpop.permute.xlu0 %695
  %v698 = vadd.f32 %v235, %v696
  %v699 = vxor.u32 %v698, 2147483648
  %v700 = vmul.f32 %v699, 1.442695
  %v701 = vpow.pop %v700
  %v702 = vadd.f32 %v701, 1.0
  %v703 = vrcp.pop %v702
  %v704 = vmul.f32 1.0, %v703
  %v706 = vrot.slane %v235, 6
  %707 = vrot.lane.b32.xlu0 %v706, 64
  %v708 = vpop.permute.xlu0 %707
  %v710 = vsub.f32 %v614, %v708
  %v712 = vrot.slane %v710, 2
  %v714 = vmul.f32 %v691, %v712
  %715 = vrot.lane.b32.xlu0 %v235, 64
  %v716 = vpop.permute.xlu0 %715
  %v718 = vadd.f32 %v714, %v716
  %719 = vrot.lane.b32.xlu0 %v235, 32
  %v720 = vpop.permute.xlu0 %719
  %v722 = vsub.f32 %v718, %v720
  %724 = vrot.lane.b32.xlu0 %v722, 32
  %v725 = vpop.permute.xlu0 %724
  %v727 = vmul.f32 %v704, %v725
  %v728 = vadd.f32 %v727, %v716
  %730 = vrot.lane.b32.xlu0 %v664, 64
  %v731 = vpop.permute.xlu0 %730
  %v733 = vmul.f32 %v247, %v731
  %v735 = vrot.slane %v733, 6
  %736 = vrot.lane.b32.xlu0 %v735, 64
  %v737 = vpop.permute.xlu0 %736
  %v739 = vadd.f32 %v239, %v737
  %v740 = vxor.u32 %v739, 2147483648
  %v741 = vmul.f32 %v740, 1.442695
  %v742 = vpow.pop %v741
  %v743 = vadd.f32 %v742, 1.0
  %v744 = vrcp.pop %v743
  %v745 = vmul.f32 1.0, %v744
  %v746 = vmul.f32 %v252, %v731
  %v748 = vrot.slane %v746, 6
  %749 = vrot.lane.b32.xlu0 %v748, 96
  %v750 = vpop.permute.xlu0 %749
  %v752 = vadd.f32 %v239, %v750
  %v753 = vxor.u32 %v752, 2147483648
  %v754 = vmul.f32 %v753, 1.442695
  %v755 = vpow.pop %v754
  %v756 = vadd.f32 %v755, 1.0
  %v757 = vrcp.pop %v756
  %v758 = vmul.f32 1.0, %v757
  %v759 = vsub.f32 %v664, %v654
  %v761 = vrot.slane %v759, 6
  %v763 = vmul.f32 %v745, %v761
  %v764 = vadd.f32 %v763, %v662
  %v765 = vsub.f32 %v764, %v666
  %767 = vrot.lane.b32.xlu0 %v765, 32
  %v768 = vpop.permute.xlu0 %767
  %v770 = vmul.f32 %v758, %v768
  %v771 = vadd.f32 %v770, %v662
  %v773 = vrot.slane %v718, 6
  %774 = vrot.lane.b32.xlu0 %v773, 64
  %v775 = vpop.permute.xlu0 %774
  %v777 = vmul.f32 %v257, %v775
  %v779 = vrot.slane %v777, 4
  %780 = vrot.lane.b32.xlu0 %v779, 64
  %v781 = vpop.permute.xlu0 %780
  %v783 = vadd.f32 %v235, %v781
  %v784 = vxor.u32 %v783, 2147483648
  %v785 = vmul.f32 %v784, 1.442695
  %v786 = vpow.pop %v785
  %v787 = vadd.f32 %v786, 1.0
  %v788 = vrcp.pop %v787
  %v789 = vmul.f32 1.0, %v788
  %v790 = vmul.f32 %v262, %v775
  %v792 = vrot.slane %v790, 4
  %793 = vrot.lane.b32.xlu0 %v792, 96
  %v794 = vpop.permute.xlu0 %793
  %v796 = vadd.f32 %v235, %v794
  %v797 = vxor.u32 %v796, 2147483648
  %v798 = vmul.f32 %v797, 1.442695
  %v799 = vpow.pop %v798
  %v800 = vadd.f32 %v799, 1.0
  %v801 = vrcp.pop %v800
  %v802 = vmul.f32 1.0, %v801
  %v803 = vsub.f32 %v718, %v708
  %v805 = vrot.slane %v803, 2
  %v807 = vmul.f32 %v789, %v805
  %v808 = vadd.f32 %v807, %v716
  %v809 = vsub.f32 %v808, %v720
  %811 = vrot.lane.b32.xlu0 %v809, 32
  %v812 = vpop.permute.xlu0 %811
  %v814 = vmul.f32 %v802, %v812
  %v815 = vadd.f32 %v814, %v716
  %v817 = vrot.slane %v764, 2
  %818 = vrot.lane.b32.xlu0 %v817, 64
  %v819 = vpop.permute.xlu0 %818
  %v821 = vmul.f32 %v247, %v819
  %v823 = vrot.slane %v821, 4
  %824 = vrot.lane.b32.xlu0 %v823, 64
  %v825 = vpop.permute.xlu0 %824
  %v827 = vadd.f32 %v239, %v825
  %v828 = vxor.u32 %v827, 2147483648
  %v829 = vmul.f32 %v828, 1.442695
  %v830 = vpow.pop %v829
  %v831 = vadd.f32 %v830, 1.0
  %v832 = vrcp.pop %v831
  %v833 = vmul.f32 1.0, %v832
  %v834 = vmul.f32 %v252, %v819
  %v836 = vrot.slane %v834, 4
  %837 = vrot.lane.b32.xlu0 %v836, 96
  %v838 = vpop.permute.xlu0 %837
  %v840 = vadd.f32 %v239, %v838
  %v841 = vxor.u32 %v840, 2147483648
  %v842 = vmul.f32 %v841, 1.442695
  %v843 = vpow.pop %v842
  %v844 = vadd.f32 %v843, 1.0
  %v845 = vrcp.pop %v844
  %v846 = vmul.f32 1.0, %v845
  %v847 = vsub.f32 %v764, %v654
  %v849 = vrot.slane %v847, 6
  %v851 = vmul.f32 %v833, %v849
  %v852 = vadd.f32 %v851, %v662
  %v853 = vsub.f32 %v852, %v666
  %855 = vrot.lane.b32.xlu0 %v853, 32
  %v856 = vpop.permute.xlu0 %855
  %v858 = vmul.f32 %v846, %v856
  %v859 = vadd.f32 %v858, %v662
  %v861 = vrot.slane %v808, 4
  %862 = vrot.lane.b32.xlu0 %v861, 64
  %v863 = vpop.permute.xlu0 %862
  %v865 = vmul.f32 %v257, %v863
  %v867 = vrot.slane %v865, 6
  %868 = vrot.lane.b32.xlu0 %v867, 64
  %v869 = vpop.permute.xlu0 %868
  %v871 = vadd.f32 %v235, %v869
  %v872 = vxor.u32 %v871, 2147483648
  %v873 = vmul.f32 %v872, 1.442695
  %v874 = vpow.pop %v873
  %v875 = vadd.f32 %v874, 1.0
  %v876 = vrcp.pop %v875
  %v877 = vmul.f32 1.0, %v876
  %v878 = vmul.f32 %v262, %v863
  %v880 = vrot.slane %v878, 6
  %881 = vrot.lane.b32.xlu0 %v880, 96
  %v882 = vpop.permute.xlu0 %881
  %v884 = vadd.f32 %v235, %v882
  %v885 = vxor.u32 %v884, 2147483648
  %v886 = vmul.f32 %v885, 1.442695
  %v887 = vpow.pop %v886
  %v888 = vadd.f32 %v887, 1.0
  %v889 = vrcp.pop %v888
  %v890 = vmul.f32 1.0, %v889
  %v891 = vsub.f32 %v808, %v708
  %v893 = vrot.slane %v891, 2
  %v895 = vmul.f32 %v877, %v893
  %v896 = vadd.f32 %v895, %v716
  %v897 = vsub.f32 %v896, %v720
  %899 = vrot.lane.b32.xlu0 %v897, 32
  %v900 = vpop.permute.xlu0 %899
  %v902 = vmul.f32 %v890, %v900
  %v903 = vadd.f32 %v902, %v716
  %v905 = vrot.slane %v852, 4
  %906 = vrot.lane.b32.xlu0 %v905, 64
  %v907 = vpop.permute.xlu0 %906
  %v909 = vmul.f32 %v247, %v907
  %v911 = vrot.slane %v909, 2
  %912 = vrot.lane.b32.xlu0 %v911, 64
  %v913 = vpop.permute.xlu0 %912
  %v915 = vadd.f32 %v239, %v913
  %v916 = vxor.u32 %v915, 2147483648
  %v917 = vmul.f32 %v916, 1.442695
  %v918 = vpow.pop %v917
  %v919 = vadd.f32 %v918, 1.0
  %v920 = vrcp.pop %v919
  %v921 = vmul.f32 1.0, %v920
  %v922 = vmul.f32 %v252, %v907
  %v924 = vrot.slane %v922, 2
  %925 = vrot.lane.b32.xlu0 %v924, 96
  %v926 = vpop.permute.xlu0 %925
  %v928 = vadd.f32 %v239, %v926
  %v929 = vxor.u32 %v928, 2147483648
  %v930 = vmul.f32 %v929, 1.442695
  %v931 = vpow.pop %v930
  %v932 = vadd.f32 %v931, 1.0
  %v933 = vrcp.pop %v932
  %v934 = vmul.f32 1.0, %v933
  %v935 = vsub.f32 %v852, %v654
  %v937 = vrot.slane %v935, 6
  %v939 = vmul.f32 %v921, %v937
  %v940 = vadd.f32 %v939, %v662
  %v941 = vsub.f32 %v940, %v666
  %943 = vrot.lane.b32.xlu0 %v941, 32
  %v944 = vpop.permute.xlu0 %943
  %v946 = vmul.f32 %v934, %v944
  %v947 = vadd.f32 %v946, %v662
  %v949 = vrot.slane %v896, 2
  %950 = vrot.lane.b32.xlu0 %v949, 64
  %v951 = vpop.permute.xlu0 %950
  %v953 = vmul.f32 %v257, %v951
  %955 = vrot.lane.b32.xlu0 %v953, 64
  %v956 = vpop.permute.xlu0 %955
  %v958 = vadd.f32 %v235, %v956
  %v959 = vxor.u32 %v958, 2147483648
  %v960 = vmul.f32 %v959, 1.442695
  %v961 = vpow.pop %v960
  %v962 = vadd.f32 %v961, 1.0
  %v963 = vrcp.pop %v962
  %v964 = vmul.f32 1.0, %v963
  %v965 = vmul.f32 %v262, %v951
  %967 = vrot.lane.b32.xlu0 %v965, 96
  %v968 = vpop.permute.xlu0 %967
  %v970 = vadd.f32 %v235, %v968
  %v971 = vxor.u32 %v970, 2147483648
  %v972 = vmul.f32 %v971, 1.442695
  %v973 = vpow.pop %v972
  %v974 = vadd.f32 %v973, 1.0
  %v975 = vrcp.pop %v974
  %v976 = vmul.f32 1.0, %v975
  %v977 = vsub.f32 %v896, %v708
  %v979 = vrot.slane %v977, 2
  %v981 = vmul.f32 %v964, %v979
  %v982 = vadd.f32 %v981, %v716
  %v983 = vsub.f32 %v982, %v720
  %985 = vrot.lane.b32.xlu0 %v983, 32
  %v986 = vpop.permute.xlu0 %985
  %v988 = vmul.f32 %v976, %v986
  %v989 = vadd.f32 %v988, %v716
  %vm990 = vcmask 1041408
  %v991 = vsel %vm990, %v307, %v399
  %vm992 = vcmask 1043456
  %v993 = vsel %vm992, %v991, %v491
  %vm994 = vcmask 1045504
  %v995 = vsel %vm994, %v993, %v579
  %v996 = vsel %vm990, %v674, %v771
  %v997 = vsel %vm992, %v996, %v859
  %v998 = vsel %vm994, %v997, %v947
  %v999 = vsel %vm990, %v989, %v903
  %v1000 = vsel %vm992, %v999, %v815
  %v1001 = vsel %vm994, %v1000, %v728
  %v1002 = vsel %vm990, %v621, %v535
  %v1003 = vsel %vm992, %v1002, %v447
  %v1004 = vsel %vm994, %v1003, %v352
  %1007 = vrot.lane.b32.xlu0 %v995, 32
  %v1008 = vpop.permute.xlu0 %1007
  %1009 = vrot.lane.b32.xlu0 %v998, 32
  %v1010 = vpop.permute.xlu0 %1009
  %1015 = vrot.lane.b32.xlu0 %v1001, 64
  %v1016 = vpop.permute.xlu0 %1015
  %1017 = vrot.lane.b32.xlu0 %v1004, 64
  %v1018 = vpop.permute.xlu0 %1017
  %v1021 = vsel %vm112, %v1008, %v1016
  %v1022 = vsel %vm112, %v1010, %v1018
  %v1023 = vld [vmem:[%s5] sm:$0xff]
  %v1024 = vld [vmem:[%s5 + $0x8] sm:$0xff]
  %v1025 = vld [vmem:[%s5 + $0x10] sm:$0xff]
  %v1026 = vld [vmem:[%s5 + $0x18] sm:$0xff]
  %v1027 = vld [vmem:[%s5 + $0x20] sm:$0xff]
  %v1028 = vld [vmem:[%s5 + $0x28] sm:$0xff]
  %v1029 = vld [vmem:[%s5 + $0x30] sm:$0xff]
  %v1030 = vld [vmem:[%s5 + $0x38] sm:$0xff]
  %vm1031 = vcmask 523264
  %v1033 = vsel %vm1031, %v1021, 0
  %v1036 = vsel %vm1031, %v1022, 0
  %1038 = vmatprep.subr.mxu0 0.0
  %1039 = vmatpush1.msra.mxu0 %v1023
  %1040 = vmatprep.subr.mxu0 0.0
  %1041 = vmatpush1.msra.mxu0 %v1024
  %1042 = vmatprep.subr.mxu0 0.0
  %1043 = vmatpush1.msra.mxu0 %v1025
  %1044 = vmatprep.subr.mxu0 0.0
  %1045 = vmatpush1.msra.mxu0 %v1026
  %1046 = vmatprep.subr.mxu0 0.0
  %1047 = vmatpush1.msra.mxu0 %v1027
  %1048 = vmatprep.subr.mxu0 0.0
  %1049 = vmatpush1.msra.mxu0 %v1028
  %1050 = vmatprep.subr.mxu0 0.0
  %1051 = vmatpush1.msra.mxu0 %v1029
  %1052 = vmatprep.subr.mxu0 0.0
  %1053 = vmatpush1.msra.mxu0 %v1030
  %1054 = vmatprep.subr.mxu0 0.0
  %1055 = vmatpush1.msra.mxu0 0.0
  %1056 = vmatprep.subr.mxu0 0.0
  %1057 = vmatpush1.msra.mxu0 0.0
  %1058 = vmatprep.subr.mxu0 0.0
  %1059 = vmatpush1.msra.mxu0 0.0
  %1060 = vmatprep.subr.mxu0 0.0
  %1061 = vmatpush1.msra.mxu0 0.0
  %1062 = vmatprep.subr.mxu0 0.0
  %1063 = vmatpush1.msra.mxu0 0.0
  %1064 = vmatprep.subr.mxu0 0.0
  %1065 = vmatpush1.msra.mxu0 0.0
  %1066 = vmatprep.subr.mxu0 0.0
  %1067 = vmatpush1.msra.mxu0 0.0
  %1068 = vmatprep.subr.mxu0 0.0
  %1069 = vmatpush1.msra.mxu0 0.0
  %1070 = vmatprep.subr.mxu0 0.0
  %1071 = vmatpush1.msra.mxu0 0.0
  %1072 = vmatprep.subr.mxu0 0.0
  %1073 = vmatpush1.msra.mxu0 0.0
  %1074 = vmatprep.subr.mxu0 0.0
  %1075 = vmatpush1.msra.mxu0 0.0
  %1076 = vmatprep.subr.mxu0 0.0
  %1077 = vmatpush1.msra.mxu0 0.0
  %1078 = vmatprep.subr.mxu0 0.0
  %1079 = vmatpush1.msra.mxu0 0.0
  %1080 = vmatprep.subr.mxu0 0.0
  %1081 = vmatpush1.msra.mxu0 0.0
  %1082 = vmatprep.subr.mxu0 0.0
  %1083 = vmatpush1.msra.mxu0 0.0
  %1084 = vmatprep.subr.mxu0 0.0
  %1085 = vmatpush1.msra.mxu0 0.0
  %1086 = vmatprep.subr.mxu0 0.0
  %1087 = vmatpush1.msra.mxu0 0.0
  %1088 = vmatprep.subr.mxu0 0.0
  %1089 = vmatpush1.msra.mxu0 0.0
  %1090 = vmatprep.subr.mxu0 0.0
  %1091 = vmatpush1.msra.mxu0 0.0
  %1092 = vmatprep.subr.mxu0 0.0
  %1093 = vmatpush1.msra.mxu0 0.0
  %1094 = vmatprep.subr.mxu0 0.0
  %1095 = vmatpush1.msra.mxu0 0.0
  %1096 = vmatprep.subr.mxu0 0.0
  %1097 = vmatpush1.msra.mxu0 0.0
  %1098 = vmatprep.subr.mxu0 0.0
  %1099 = vmatpush1.msra.mxu0 0.0
  %1100 = vmatprep.subr.mxu0 0.0
  %1101 = vmatpush1.msra.mxu0 0.0
  %1102 = vmatprep.mubr.f32.mxu0 0.0
  %1103 = vmatmul.mubr.f32.gmra.mrb[0].mxu0 %v1033
  %v1104 = vpop.f32.mrb[0].mxu0
  %v1105 = vadd.f32 0.0, %v1104
  %v1106 = vpop.f32.mrb[0].mxu0
  %1107 = vmatprep.mubr.f32.mxu0 0.0
  %1108 = vmatmul.mubr.f32.gmra.mrb[0].mxu0 %v1036
  %v1109 = vpop.f32.mrb[0].mxu0
  %v1110 = vadd.f32 0.0, %v1109
  %v1111 = vpop.f32.mrb[0].mxu0
  %1112 = vdwg.mxu0
  %v1113 = vmul.f32 %v104, %v1105
  %v1114 = vmul.f32 %v109, %v1110
  %v1115 = vld [vmem:[%s6] sm:$0xff]
  %v1116 = vld [vmem:[%s6 + $0x8] sm:$0xff]
  %v1117 = vld [vmem:[%s6 + $0x10] sm:$0xff]
  %v1118 = vld [vmem:[%s6 + $0x18] sm:$0xff]
  %v1120 = vsel %vm112, %v1113, 0
  %v1123 = vsel %vm112, %v1114, 0
  %1125 = vmatprep.subr.mxu0 0.0
  %1126 = vmatpush1.msra.mxu0 %v1115
  %1127 = vmatprep.subr.mxu0 0.0
  %1128 = vmatpush1.msra.mxu0 %v1116
  %1129 = vmatprep.subr.mxu0 0.0
  %1130 = vmatpush1.msra.mxu0 %v1117
  %1131 = vmatprep.subr.mxu0 0.0
  %1132 = vmatpush1.msra.mxu0 %v1118
  %1133 = vmatprep.subr.mxu0 0.0
  %1134 = vmatpush1.msra.mxu0 0.0
  %1135 = vmatprep.subr.mxu0 0.0
  %1136 = vmatpush1.msra.mxu0 0.0
  %1137 = vmatprep.subr.mxu0 0.0
  %1138 = vmatpush1.msra.mxu0 0.0
  %1139 = vmatprep.subr.mxu0 0.0
  %1140 = vmatpush1.msra.mxu0 0.0
  %1141 = vmatprep.subr.mxu0 0.0
  %1142 = vmatpush1.msra.mxu0 0.0
  %1143 = vmatprep.subr.mxu0 0.0
  %1144 = vmatpush1.msra.mxu0 0.0
  %1145 = vmatprep.subr.mxu0 0.0
  %1146 = vmatpush1.msra.mxu0 0.0
  %1147 = vmatprep.subr.mxu0 0.0
  %1148 = vmatpush1.msra.mxu0 0.0
  %1149 = vmatprep.subr.mxu0 0.0
  %1150 = vmatpush1.msra.mxu0 0.0
  %1151 = vmatprep.subr.mxu0 0.0
  %1152 = vmatpush1.msra.mxu0 0.0
  %1153 = vmatprep.subr.mxu0 0.0
  %1154 = vmatpush1.msra.mxu0 0.0
  %1155 = vmatprep.subr.mxu0 0.0
  %1156 = vmatpush1.msra.mxu0 0.0
  %1157 = vmatprep.subr.mxu0 0.0
  %1158 = vmatpush1.msra.mxu0 0.0
  %1159 = vmatprep.subr.mxu0 0.0
  %1160 = vmatpush1.msra.mxu0 0.0
  %1161 = vmatprep.subr.mxu0 0.0
  %1162 = vmatpush1.msra.mxu0 0.0
  %1163 = vmatprep.subr.mxu0 0.0
  %1164 = vmatpush1.msra.mxu0 0.0
  %1165 = vmatprep.subr.mxu0 0.0
  %1166 = vmatpush1.msra.mxu0 0.0
  %1167 = vmatprep.subr.mxu0 0.0
  %1168 = vmatpush1.msra.mxu0 0.0
  %1169 = vmatprep.subr.mxu0 0.0
  %1170 = vmatpush1.msra.mxu0 0.0
  %1171 = vmatprep.subr.mxu0 0.0
  %1172 = vmatpush1.msra.mxu0 0.0
  %1173 = vmatprep.subr.mxu0 0.0
  %1174 = vmatpush1.msra.mxu0 0.0
  %1175 = vmatprep.subr.mxu0 0.0
  %1176 = vmatpush1.msra.mxu0 0.0
  %1177 = vmatprep.subr.mxu0 0.0
  %1178 = vmatpush1.msra.mxu0 0.0
  %1179 = vmatprep.subr.mxu0 0.0
  %1180 = vmatpush1.msra.mxu0 0.0
  %1181 = vmatprep.subr.mxu0 0.0
  %1182 = vmatpush1.msra.mxu0 0.0
  %1183 = vmatprep.subr.mxu0 0.0
  %1184 = vmatpush1.msra.mxu0 0.0
  %1185 = vmatprep.subr.mxu0 0.0
  %1186 = vmatpush1.msra.mxu0 0.0
  %1187 = vmatprep.subr.mxu0 0.0
  %1188 = vmatpush1.msra.mxu0 0.0
  %1189 = vmatprep.mubr.f32.mxu0 0.0
  %1190 = vmatmul.mubr.f32.gmra.mrb[0].mxu0 %v1120
  %v1191 = vpop.f32.mrb[0].mxu0
  %v1192 = vadd.f32 0.0, %v1191
  %v1193 = vpop.f32.mrb[0].mxu0
  %1194 = vmatprep.mubr.f32.mxu0 0.0
  %1195 = vmatmul.mubr.f32.gmra.mrb[0].mxu0 %v1123
  %v1196 = vpop.f32.mrb[0].mxu0
  %v1197 = vadd.f32 0.0, %v1196
  %v1198 = vpop.f32.mrb[0].mxu0
  %1199 = vdwg.mxu0
  %v1200 = vtanh.pop %v1192
  %v1201 = vtanh.pop %v1197
  %1202 = vst.msk [vmem:[%s7] sm:$0xff] %vm30, %v1200
  %1203 = vst.msk [vmem:[%s7 + $0x8] sm:$0xff] %vm30, %v1201
  // Predicated region
  $region30: #{conv_bsru_forward.1} parent=0 // pred_check
    _
  $region31: #{conv_bsru_forward.1} parent=0 // pred_check_branch
    %1205 = sbr.rel (0) target = $region33
  $region32: #{conv_bsru_forward.1} parent=0 // pred_region
    _
  $region33: #{conv_bsru_forward.1} parent=0 // pred_fallthru
    _
  // Predicated region
  $region34: #{conv_bsru_forward.1} parent=0 // pred_check
    _
  $region35: #{conv_bsru_forward.1} parent=0 // pred_check_branch
    %1207 = sbr.rel (0) target = $region37
  $region36: #{conv_bsru_forward.1} parent=0 // pred_region
    _
  $region37: #{conv_bsru_forward.1} parent=0 // pred_fallthru
    _

</llo_original>
